<compile_context>
chip_gen: v7x
topology: tpu7x:2x2x1
jax: 0.10.0
libtpu: 0.0.40
codegen_flags: <defaults>
</compile_context>

<pallas_src>
import jax
import jax.numpy as jnp
from jax.experimental import pallas as pl
from jax.experimental.pallas import tpu as pltpu

FREQ_THRES = 4          # cfg.freq_thres
COPY_WEIGHT = 1.0
LN_EPS = 1e-3
NEG_INF = -1e30
LANE = 128


def _round_up(x, m):
    return ((x + m - 1) // m) * m


# --------------------------------------------------------------------------
# Pallas kernel: whole ResponseDecoder.forward, single invocation.
# --------------------------------------------------------------------------
def response_decoder_kernel(
    ids_ref,                                   # SMEM [1, B] int32
    z_ref, u_ref, pz_ref, h0_ref,              # VMEM [Tz*B,H] [Tu*B,H] [Tz*B,Vp] [B,H]
    emb_hbm,                                   # ANY  [V, E]  (HBM; only B rows DMA'd)
    azW_ref, azb_ref, azv_ref,
    auW_ref, aub_ref, auv_ref,
    wi3_ref, wh3_ref, bx3_ref, bh3_ref,        # fused GRU weights/biases
    lna_ref, lnb_ref,
    projW_ref, projb_ref,                      # padded to Vp (pad bias = -1e30)
    pcW_ref, pcb_ref, v1w_ref, v1b_ref,
    fmask_ref,                                 # [1, Vp]
    proba_ref, hout_ref,                       # outputs: [B, Vp], [B, H]
    memb_sc, zWe_sc, uWe_sc, csW_sc, emb_sem,  # scratch
):
    B, H = h0_ref.shape
    Tz = z_ref.shape[0] // B
    Tu = u_ref.shape[0] // B
    E = memb_sc.shape[1]

    def mm(a, b):
        return jnp.dot(a, b, preferred_element_type=jnp.float32)

    # ---- kick off B embedding-row gathers from HBM (overlap with attention) ----
    emb_copies = []
    for b in range(B):
        cp = pltpu.make_async_copy(
            emb_hbm.at[pl.ds(ids_ref[0, b], 1), :],
            memb_sc.at[pl.ds(b, 1), :],
            emb_sem.at[b])
        cp.start()
        emb_copies.append(cp)

    h = h0_ref[...]                                                  # [B, H]

    # ---- load weights once (hoisted out of all loops) ----
    azW, azb, azv = azW_ref[...], azb_ref[...], azv_ref[...]
    auW, aub, auv = auW_ref[...], aub_ref[...], auv_ref[...]
    wi3, wh3 = wi3_ref[...], wh3_ref[...]
    bx3, bh3 = bx3_ref[...], bh3_ref[...]
    lna, lnb = lna_ref[...], lnb_ref[...]
    projW, projb = projW_ref[...], projb_ref[...]
    pcW, pcb = pcW_ref[...], pcb_ref[...]
    v1w, v1b = v1w_ref[...], v1b_ref[...]
    fmask = fmask_ref[...]

    azW_h, azW_e = azW[0:H, :], azW[H:2 * H, :]
    auW_h, auW_e = auW[0:H, :], auW[H:2 * H, :]
    pcW_z, pcW_g = pcW[0:H, :], pcW[H:2 * H, :]

    # ---- encoder-side matmuls batched over the full [T*B, H] slabs ----
    zWe_sc[...] = mm(z_ref[...], azW_e)                              # [Tz*B, H]
    uWe_sc[...] = mm(u_ref[...], auW_e)                              # [Tu*B, H]
    csW_sc[...] = mm(z_ref[...], pcW_z)                              # [Tz*B, H]
    hWz = mm(h, azW_h)                                               # [B, H]
    hWu = mm(h, auW_h)                                               # [B, H]

    def attn_ctx(encW_sc, enc_ref, T, b, hW_b, bvec, vvec):
        # score_t = v . tanh(W_e enc_t + W_h h + b); softmax over t; ctx = sum_t a_t enc_t
        rows = pl.ds(b, T, stride=B)
        energy = jnp.tanh(encW_sc[rows, :] + hW_b + bvec)            # [T, H]
        score = jnp.sum(energy * vvec, axis=-1, keepdims=True)       # [T, 1]
        score = score - jnp.max(score, axis=0, keepdims=True)
        e = jnp.exp(score)
        a = e * pl.reciprocal(jnp.sum(e, axis=0, keepdims=True), approx=True)
        return jnp.sum(a * enc_ref[rows, :], axis=0, keepdims=True)  # [1, H]

    # only the per-example time-softmax / reduction stays in the B unroll
    z_ctxs, u_ctxs = [], []
    for b in range(B):
        z_ctxs.append(attn_ctx(zWe_sc, z_ref, Tz, b, hWz[b:b + 1, :], azb, azv))
        u_ctxs.append(attn_ctx(uWe_sc, u_ref, Tu, b, hWu[b:b + 1, :], aub, auv))
    z_ctx = jnp.concatenate(z_ctxs, axis=0)                          # [B, H]
    u_ctx = jnp.concatenate(u_ctxs, axis=0)                          # [B, H]

    # ---- embedding rows have landed by now ----
    for cp in emb_copies:
        cp.wait()
    m_emb = memb_sc[...]                                             # [B, E]

    # ---- fused GRU cell on x = [z_ctx | u_ctx | m_emb] ----
    gx = (mm(z_ctx, wi3[0:H, :]) + mm(u_ctx, wi3[H:2 * H, :])
          + mm(m_emb, wi3[2 * H:2 * H + E, :]) + bx3)                # [B, 3H]
    gh = mm(h, wh3) + bh3                                            # [B, 3H]
    r = jax.nn.sigmoid(gx[:, 0:H] + gh[:, 0:H])
    zg = jax.nn.sigmoid(gx[:, H:2 * H] + gh[:, H:2 * H])
    n = jnp.tanh(gx[:, 2 * H:3 * H] + r * gh[:, 2 * H:3 * H])
    h_new = (1.0 - zg) * n + zg * h                                  # [B, H]
    hout_ref[...] = h_new

    # ---- LayerNormalization (unbiased std, eps added to sigma) ----
    mu = jnp.mean(h_new, axis=-1, keepdims=True)
    var = jnp.sum((h_new - mu) ** 2, axis=-1, keepdims=True) / (H - 1)
    inv_sigma = pl.reciprocal(jnp.sqrt(var) + LN_EPS, approx=False)
    gru_out = (h_new - mu) * inv_sigma * lna + lnb                   # [B, H]

    # ---- generation scores (lane-dense padded vocab), batched over B ----
    gen = mm(gru_out, projW) + projb                                 # [B, Vp]
    gW = mm(gru_out, pcW_g)                                          # [B, H]

    gen_mx = jnp.max(gen, axis=1, keepdims=True)                     # [B, 1]
    eg0 = jnp.exp(gen - gen_mx)                                      # [B, Vp]  (one EUP pass)
    sg0 = jnp.sum(eg0, axis=1, keepdims=True)                        # [B, 1]

    # ---- per-example copy branch of the joint softmax (tiny [Tz,*] work only) ----
    gen_coefs, zc_rows = [], []
    for b in range(B):
        rows = pl.ds(b, Tz, stride=B)
        cs = jnp.tanh(csW_sc[rows, :] + gW[b:b + 1, :] + pcb)        # [Tz, H]
        copy = jnp.sum(cs * v1w, axis=-1, keepdims=True) + v1b       # [Tz, 1]
        copy_mx = jnp.max(copy, axis=0, keepdims=True)               # [1, 1]
        mx = jnp.maximum(gen_mx[b:b + 1, :], copy_mx)                # joint max
        sgen = jnp.exp(gen_mx[b:b + 1, :] - mx)                      # rescale of gen sum
        ec = jnp.exp(copy - mx)                                      # [Tz, 1]
        inv = pl.reciprocal(sg0[b:b + 1, :] * sgen
                            + jnp.sum(ec, axis=0, keepdims=True), approx=True)
        gen_coefs.append(sgen * inv)                                 # [1, 1]
        copy_s = ec * inv                                            # [Tz, 1]
        zc_rows.append(jnp.sum(copy_s * pz_ref[rows, :],
                               axis=0, keepdims=True))               # [1, Vp]

    gen_coef = jnp.concatenate(gen_coefs, axis=0)                    # [B, 1]
    zc = jnp.concatenate(zc_rows, axis=0)                            # [B, Vp]

    # single lane-dense [B, Vp] store
    proba_ref[...] = eg0 * gen_coef + (COPY_WEIGHT * fmask) * zc


# --------------------------------------------------------------------------
# Parameter init (deterministic, synthetic), one-time prep, wrapper
# --------------------------------------------------------------------------
def init_params(key, E, H, V):
    ks = jax.random.split(key, 23)

    def init(k, shape, scale=0.1):
        return (scale * jax.random.normal(k, shape)).astype(jnp.float32)

    D = 2 * H + E
    return dict(
        emb=init(ks[0], (V, E)),
        azW=init(ks[1], (2 * H, H)), azb=init(ks[2], (1, H)), azv=init(ks[3], (1, H)),
        auW=init(ks[4], (2 * H, H)), aub=init(ks[5], (1, H)), auv=init(ks[6], (1, H)),
        wir=init(ks[7], (D, H)), wiz=init(ks[8], (D, H)), win=init(ks[9], (D, H)),
        whr=init(ks[10], (H, H)), whz=init(ks[11], (H, H)), whn=init(ks[12], (H, H)),
        br=init(ks[13], (1, H)), bz=init(ks[14], (1, H)),
        bin=init(ks[15], (1, H)), bhn=init(ks[16], (1, H)),
        lna=jnp.ones((1, H), jnp.float32), lnb=jnp.zeros((1, H), jnp.float32),
        projW=init(ks[17], (H, V)), projb=init(ks[18], (1, V)),
        pcW=init(ks[19], (2 * H, H)), pcb=init(ks[20], (1, H)),
        v1w=init(ks[21], (1, H)), v1b=init(ks[22], (1, 1)),
    )


def build_freq_mask(V):
    return jnp.concatenate(
        [jnp.zeros((FREQ_THRES,), jnp.float32),
         jnp.ones((V - FREQ_THRES,), jnp.float32)]).reshape(1, V)


def prepare_params(params, V):
    """One-time parameter fusion / vocab padding (hoisted out of the per-step call)."""
    H = params["whr"].shape[0]
    Vp = _round_up(V, LANE)
    padV = Vp - V
    prep = dict(
        emb=params["emb"],
        azW=params["azW"], azb=params["azb"], azv=params["azv"],
        auW=params["auW"], aub=params["aub"], auv=params["auv"],
        wi3=jnp.concatenate([params["wir"], params["wiz"], params["win"]], axis=1),
        wh3=jnp.concatenate([params["whr"], params["whz"], params["whn"]], axis=1),
        bx3=jnp.concatenate([params["br"], params["bz"], params["bin"]], axis=1),
        bh3=jnp.concatenate([jnp.zeros((1, 2 * H), jnp.float32), params["bhn"]], axis=1),
        lna=params["lna"], lnb=params["lnb"],
        projW=jnp.pad(params["projW"], ((0, 0), (0, padV))),
        projb=jnp.pad(params["projb"], ((0, 0), (0, padV)), constant_values=NEG_INF),
        pcW=params["pcW"], pcb=params["pcb"], v1w=params["v1w"], v1b=params["v1b"],
        fmask=jnp.pad(build_freq_mask(V), ((0, 0), (0, padV))),
    )
    prep = {k: jnp.asarray(v) for k, v in prep.items()}
    return prep, Vp


def prepare_pz(pz_proba, Vp):
    """Pad/flatten the prior-decoder proba once per response (fixed across decode steps)."""
    Tz, B, V = pz_proba.shape
    return jnp.reshape(
        jnp.pad(pz_proba.astype(jnp.float32), ((0, 0), (0, 0), (0, Vp - V))),
        (Tz * B, Vp))


def response_decoder_forward(prep, Vp, z_enc_out, pz2d, u_enc_out, m_t_input, last_hidden):
    """prep: prepared params. z_enc_out [Tz,B,H], pz2d [Tz*B,Vp] (pre-padded, time-major),
    u_enc_out [Tu,B,H], m_t_input [1,B] int, last_hidden [1,B,H].
    Returns (proba [B,V], last_hidden [1,B,H])."""
    Tz, B, H = z_enc_out.shape
    Tu = u_enc_out.shape[0]
    V, E = prep["emb"].shape

    # time-major inputs are only *reshaped* (free, metadata-only) -- no transpose pass
    z2d = jnp.reshape(z_enc_out.astype(jnp.float32), (Tz * B, H))
    u2d = jnp.reshape(u_enc_out.astype(jnp.float32), (Tu * B, H))
    h0 = last_hidden[0].astype(jnp.float32)                           # [B, H]
    ids = jnp.clip(m_t_input.astype(jnp.int32), 0, V - 1)             # bounds-safe gather

    vmem_data = [z2d, u2d, pz2d, h0]
    weight_inputs = [
        prep["azW"], prep["azb"], prep["azv"],
        prep["auW"], prep["aub"], prep["auv"],
        prep["wi3"], prep["wh3"], prep["bx3"], prep["bh3"],
        prep["lna"], prep["lnb"],
        prep["projW"], prep["projb"],
        prep["pcW"], prep["pcb"], prep["v1w"], prep["v1b"],
        prep["fmask"],
    ]

    def nbytes(a):
        return int(a.size) * jnp.dtype(a.dtype).itemsize

    scratch_bytes = 4 * (B * E + 2 * (Tz * B) * H + (Tu * B) * H)
    resident = (sum(nbytes(a) for a in vmem_data + weight_inputs)
                + 4 * (B * Vp + B * H) + scratch_bytes)
    vmem_limit = int(min(100 * 1024 * 1024, 2 * resident + (4 << 20)))

    in_specs = (
        [pl.BlockSpec(memory_space=pltpu.MemorySpace.SMEM)]                 # ids
        + [pl.BlockSpec(memory_space=pltpu.MemorySpace.VMEM)] * len(vmem_data)
        + [pl.BlockSpec(memory_space=pl.ANY)]                               # emb stays in HBM
        + [pl.BlockSpec(memory_space=pltpu.MemorySpace.VMEM)] * len(weight_inputs)
    )

    proba_p, h_new = pl.pallas_call(
        response_decoder_kernel,
        out_shape=(jax.ShapeDtypeStruct((B, Vp), jnp.float32),
                   jax.ShapeDtypeStruct((B, H), jnp.float32)),
        in_specs=in_specs,
        out_specs=(pl.BlockSpec(memory_space=pltpu.MemorySpace.VMEM),
                   pl.BlockSpec(memory_space=pltpu.MemorySpace.VMEM)),
        scratch_shapes=[pltpu.VMEM((B, E), jnp.float32),
                        pltpu.VMEM((Tz * B, H), jnp.float32),
                        pltpu.VMEM((Tu * B, H), jnp.float32),
                        pltpu.VMEM((Tz * B, H), jnp.float32),
                        pltpu.SemaphoreType.DMA((B,))],
        input_output_aliases={4: 1},      # h0 buffer reused for the new hidden state
        compiler_params=pltpu.CompilerParams(vmem_limit_bytes=vmem_limit),
    )(ids, z2d, u2d, pz2d, h0, prep["emb"], *weight_inputs)

    return proba_p[:, :V], h_new[None]                                 # [B,V], [1,B,H]


# --------------------------------------------------------------------------
# Pure-JAX reference (same math, vectorized) for a numerical sanity check
# --------------------------------------------------------------------------
def reference_forward(params, z_enc_out, pz_proba, u_enc_out, m_t_input, last_hidden):
    Tz, B, H = z_enc_out.shape
    V = pz_proba.shape[2]
    fmask = build_freq_mask(V)
    h = last_hidden[0]
    m_emb = params["emb"][m_t_input[0]]

    def attn(enc_tbh, W, bvec, vvec):
        enc = jnp.transpose(enc_tbh, (1, 0, 2))                    # [B,T,H]
        cat = jnp.concatenate([jnp.broadcast_to(h[:, None, :], enc.shape), enc], axis=-1)
        energy = jnp.tanh(cat @ W + bvec[0])
        score = jnp.sum(energy * vvec[0], axis=-1)
        a = jax.nn.softmax(score, axis=-1)
        return jnp.einsum("bt,bth->bh", a, enc)

    z_ctx = attn(z_enc_out, params["azW"], params["azb"], params["azv"])
    u_ctx = attn(u_enc_out, params["auW"], params["aub"], params["auv"])
    x = jnp.concatenate([z_ctx, u_ctx, m_emb], axis=-1)
    r = jax.nn.sigmoid(x @ params["wir"] + h @ params["whr"] + params["br"][0])
    zg = jax.nn.sigmoid(x @ params["wiz"] + h @ params["whz"] + params["bz"][0])
    n = jnp.tanh(x @ params["win"] + params["bin"][0] + r * (h @ params["whn"] + params["bhn"][0]))
    h_new = (1 - zg) * n + zg * h
    mu = jnp.mean(h_new, axis=-1, keepdims=True)
    sigma = jnp.sqrt(jnp.sum((h_new - mu) ** 2, axis=-1, keepdims=True) / (H - 1))
    gru_out = (h_new - mu) / (sigma + LN_EPS) * params["lna"][0] + params["lnb"][0]
    gen = gru_out @ params["projW"] + params["projb"][0]
    z_enc_b = jnp.transpose(z_enc_out, (1, 0, 2))
    cat2 = jnp.concatenate([z_enc_b, jnp.broadcast_to(gru_out[:, None, :], z_enc_b.shape)], axis=-1)
    cs = jnp.tanh(cat2 @ params["pcW"] + params["pcb"][0])
    copy = jnp.sum(cs * params["v1w"][0], axis=-1) + params["v1b"][0, 0]
    scores = jax.nn.softmax(jnp.concatenate([gen, copy], axis=1), axis=1)
    gen_s, copy_s = scores[:, :V], scores[:, V:]
    pz_b = jnp.transpose(pz_proba, (1, 0, 2))
    zc = jnp.einsum("bt,btv->bv", copy_s, pz_b) * fmask[0]
    return gen_s + COPY_WEIGHT * zc, h_new[None]


if __name__ == "__main__":
    B, Tz, Tu, H, E, V = 2, 8, 8, 32, 32, 64

    key = jax.random.PRNGKey(0)
    kp, kz, ku, kpz, km, kh = jax.random.split(key, 6)
    params = init_params(kp, E, H, V)
    prep, Vp = prepare_params(params, V)        # one-time weight fusion / padding

    z_enc_out = jax.random.normal(kz, (Tz, B, H), jnp.float32)
    u_enc_out = jax.random.normal(ku, (Tu, B, H), jnp.float32)
    pz_proba = jax.nn.softmax(jax.random.normal(kpz, (Tz, B, V), jnp.float32), axis=-1)
    m_t_input = jax.random.randint(km, (1, B), 0, V)
    last_hidden = 0.1 * jax.random.normal(kh, (1, B, H), jnp.float32)

    pz2d = prepare_pz(pz_proba, Vp)             # once per response, not per decode step

    proba, h_out = response_decoder_forward(prep, Vp, z_enc_out, pz2d, u_enc_out,
                                            m_t_input, last_hidden)
    (proba, h_out) = jax.block_until_ready((proba, h_out))

    ref_p, ref_h = reference_forward(params, z_enc_out, pz_proba, u_enc_out,
                                     m_t_input, last_hidden)

    assert proba.shape == (B, V) and h_out.shape == (1, B, H)
    assert bool(jnp.all(jnp.isfinite(proba))) and bool(jnp.all(jnp.isfinite(h_out)))
    assert bool(jnp.allclose(proba, ref_p, atol=1e-3, rtol=1e-3))
    assert bool(jnp.allclose(h_out, ref_h, atol=1e-3, rtol=1e-3))
    print("KERNEL_OK")
</pallas_src>

<mosaic_0001>
module attributes {stable_mosaic.version = 11 : i64} {
  func.func @response_decoder_kernel(%arg0: memref<1x2xi32, #tpu.memory_space<smem>>, %arg1: memref<16x32xf32, #tpu.memory_space<vmem>>, %arg2: memref<16x32xf32, #tpu.memory_space<vmem>>, %arg3: memref<16x128xf32, #tpu.memory_space<vmem>>, %arg4: memref<2x32xf32, #tpu.memory_space<vmem>>, %arg5: memref<64x32xf32, #tpu.memory_space<any>>, %arg6: memref<64x32xf32, #tpu.memory_space<vmem>>, %arg7: memref<1x32xf32, #tpu.memory_space<vmem>>, %arg8: memref<1x32xf32, #tpu.memory_space<vmem>>, %arg9: memref<64x32xf32, #tpu.memory_space<vmem>>, %arg10: memref<1x32xf32, #tpu.memory_space<vmem>>, %arg11: memref<1x32xf32, #tpu.memory_space<vmem>>, %arg12: memref<96x96xf32, #tpu.memory_space<vmem>>, %arg13: memref<32x96xf32, #tpu.memory_space<vmem>>, %arg14: memref<1x96xf32, #tpu.memory_space<vmem>>, %arg15: memref<1x96xf32, #tpu.memory_space<vmem>>, %arg16: memref<1x32xf32, #tpu.memory_space<vmem>>, %arg17: memref<1x32xf32, #tpu.memory_space<vmem>>, %arg18: memref<32x128xf32, #tpu.memory_space<vmem>>, %arg19: memref<1x128xf32, #tpu.memory_space<vmem>>, %arg20: memref<64x32xf32, #tpu.memory_space<vmem>>, %arg21: memref<1x32xf32, #tpu.memory_space<vmem>>, %arg22: memref<1x32xf32, #tpu.memory_space<vmem>>, %arg23: memref<1x1xf32, #tpu.memory_space<vmem>>, %arg24: memref<1x128xf32, #tpu.memory_space<vmem>>, %arg25: memref<2x128xf32, #tpu.memory_space<vmem>>, %arg26: memref<2x32xf32, #tpu.memory_space<vmem>>, %arg27: memref<2x32xf32, #tpu.memory_space<vmem>>, %arg28: memref<16x32xf32, #tpu.memory_space<vmem>>, %arg29: memref<16x32xf32, #tpu.memory_space<vmem>>, %arg30: memref<16x32xf32, #tpu.memory_space<vmem>>, %arg31: memref<2x!tpu.dma_semaphore, #tpu.memory_space<semaphore_mem>>) attributes {dimension_semantics = [], scalar_prefetch = 0 : i64, scratch_operands = 5 : i64, tpu.core_type = #tpu.core_type<tc>} {
    %c0 = arith.constant 0 : index
    %c0_0 = arith.constant 0 : index
    %0 = memref.load %arg0[%c0, %c0_0] : memref<1x2xi32, #tpu.memory_space<smem>>
    %c0_i32 = arith.constant 0 : i32
    %c0_i32_1 = arith.constant 0 : i32
    %1 = tpu.memref_slice %arg5[%0, %c0_i32_1] : memref<64x32xf32, #tpu.memory_space<any>> -> memref<1x32xf32, #tpu.memory_space<any>>
    %c0_i32_2 = arith.constant 0 : i32
    %c0_i32_3 = arith.constant 0 : i32
    %2 = tpu.memref_slice %arg27[%c0_i32_2, %c0_i32_3] : memref<2x32xf32, #tpu.memory_space<vmem>> -> memref<1x32xf32, #tpu.memory_space<vmem>>
    %3 = tpu.memref_slice %arg31[%c0_i32] : memref<2x!tpu.dma_semaphore, #tpu.memory_space<semaphore_mem>> -> memref<1x!tpu.dma_semaphore, #tpu.memory_space<semaphore_mem>>
    %4 = tpu.memref_squeeze %3 : memref<1x!tpu.dma_semaphore, #tpu.memory_space<semaphore_mem>> -> memref<!tpu.dma_semaphore, #tpu.memory_space<semaphore_mem>>
    tpu.enqueue_dma source(%1 : memref<1x32xf32, #tpu.memory_space<any>>) target(%2 : memref<1x32xf32, #tpu.memory_space<vmem>>) target_semaphore(%4 : memref<!tpu.dma_semaphore, #tpu.memory_space<semaphore_mem>>)
    %c0_4 = arith.constant 0 : index
    %c1 = arith.constant 1 : index
    %5 = memref.load %arg0[%c0_4, %c1] : memref<1x2xi32, #tpu.memory_space<smem>>
    %c1_i32 = arith.constant 1 : i32
    %c0_i32_5 = arith.constant 0 : i32
    %6 = tpu.memref_slice %arg5[%5, %c0_i32_5] : memref<64x32xf32, #tpu.memory_space<any>> -> memref<1x32xf32, #tpu.memory_space<any>>
    %c1_i32_6 = arith.constant 1 : i32
    %c0_i32_7 = arith.constant 0 : i32
    %7 = tpu.memref_slice %arg27[%c1_i32_6, %c0_i32_7] : memref<2x32xf32, #tpu.memory_space<vmem>> -> memref<1x32xf32, #tpu.memory_space<vmem>>
    %8 = tpu.memref_slice %arg31[%c1_i32] : memref<2x!tpu.dma_semaphore, #tpu.memory_space<semaphore_mem>> -> memref<1x!tpu.dma_semaphore, #tpu.memory_space<semaphore_mem>>
    %9 = tpu.memref_squeeze %8 : memref<1x!tpu.dma_semaphore, #tpu.memory_space<semaphore_mem>> -> memref<!tpu.dma_semaphore, #tpu.memory_space<semaphore_mem>>
    tpu.enqueue_dma source(%6 : memref<1x32xf32, #tpu.memory_space<any>>) target(%7 : memref<1x32xf32, #tpu.memory_space<vmem>>) target_semaphore(%9 : memref<!tpu.dma_semaphore, #tpu.memory_space<semaphore_mem>>)
    %c0_8 = arith.constant 0 : index
    %c0_9 = arith.constant 0 : index
    %10 = vector.load %arg4[%c0_8, %c0_9] : memref<2x32xf32, #tpu.memory_space<vmem>>, vector<2x32xf32>
    %c0_10 = arith.constant 0 : index
    %c0_11 = arith.constant 0 : index
    %11 = vector.load %arg6[%c0_10, %c0_11] : memref<64x32xf32, #tpu.memory_space<vmem>>, vector<64x32xf32>
    %c0_12 = arith.constant 0 : index
    %c0_13 = arith.constant 0 : index
    %12 = vector.load %arg7[%c0_12, %c0_13] : memref<1x32xf32, #tpu.memory_space<vmem>>, vector<1x32xf32>
    %c0_14 = arith.constant 0 : index
    %c0_15 = arith.constant 0 : index
    %13 = vector.load %arg8[%c0_14, %c0_15] : memref<1x32xf32, #tpu.memory_space<vmem>>, vector<1x32xf32>
    %c0_16 = arith.constant 0 : index
    %c0_17 = arith.constant 0 : index
    %14 = vector.load %arg9[%c0_16, %c0_17] : memref<64x32xf32, #tpu.memory_space<vmem>>, vector<64x32xf32>
    %c0_18 = arith.constant 0 : index
    %c0_19 = arith.constant 0 : index
    %15 = vector.load %arg10[%c0_18, %c0_19] : memref<1x32xf32, #tpu.memory_space<vmem>>, vector<1x32xf32>
    %c0_20 = arith.constant 0 : index
    %c0_21 = arith.constant 0 : index
    %16 = vector.load %arg11[%c0_20, %c0_21] : memref<1x32xf32, #tpu.memory_space<vmem>>, vector<1x32xf32>
    %c0_22 = arith.constant 0 : index
    %c0_23 = arith.constant 0 : index
    %17 = vector.load %arg12[%c0_22, %c0_23] : memref<96x96xf32, #tpu.memory_space<vmem>>, vector<96x96xf32>
    %c0_24 = arith.constant 0 : index
    %c0_25 = arith.constant 0 : index
    %18 = vector.load %arg13[%c0_24, %c0_25] : memref<32x96xf32, #tpu.memory_space<vmem>>, vector<32x96xf32>
    %c0_26 = arith.constant 0 : index
    %c0_27 = arith.constant 0 : index
    %19 = vector.load %arg14[%c0_26, %c0_27] : memref<1x96xf32, #tpu.memory_space<vmem>>, vector<1x96xf32>
    %c0_28 = arith.constant 0 : index
    %c0_29 = arith.constant 0 : index
    %20 = vector.load %arg15[%c0_28, %c0_29] : memref<1x96xf32, #tpu.memory_space<vmem>>, vector<1x96xf32>
    %c0_30 = arith.constant 0 : index
    %c0_31 = arith.constant 0 : index
    %21 = vector.load %arg16[%c0_30, %c0_31] : memref<1x32xf32, #tpu.memory_space<vmem>>, vector<1x32xf32>
    %c0_32 = arith.constant 0 : index
    %c0_33 = arith.constant 0 : index
    %22 = vector.load %arg17[%c0_32, %c0_33] : memref<1x32xf32, #tpu.memory_space<vmem>>, vector<1x32xf32>
    %c0_34 = arith.constant 0 : index
    %c0_35 = arith.constant 0 : index
    %23 = vector.load %arg18[%c0_34, %c0_35] : memref<32x128xf32, #tpu.memory_space<vmem>>, vector<32x128xf32>
    %c0_36 = arith.constant 0 : index
    %c0_37 = arith.constant 0 : index
    %24 = vector.load %arg19[%c0_36, %c0_37] : memref<1x128xf32, #tpu.memory_space<vmem>>, vector<1x128xf32>
    %c0_38 = arith.constant 0 : index
    %c0_39 = arith.constant 0 : index
    %25 = vector.load %arg20[%c0_38, %c0_39] : memref<64x32xf32, #tpu.memory_space<vmem>>, vector<64x32xf32>
    %c0_40 = arith.constant 0 : index
    %c0_41 = arith.constant 0 : index
    %26 = vector.load %arg21[%c0_40, %c0_41] : memref<1x32xf32, #tpu.memory_space<vmem>>, vector<1x32xf32>
    %c0_42 = arith.constant 0 : index
    %c0_43 = arith.constant 0 : index
    %27 = vector.load %arg22[%c0_42, %c0_43] : memref<1x32xf32, #tpu.memory_space<vmem>>, vector<1x32xf32>
    %c0_44 = arith.constant 0 : index
    %c0_45 = arith.constant 0 : index
    %28 = vector.load %arg23[%c0_44, %c0_45] : memref<1x1xf32, #tpu.memory_space<vmem>>, vector<1x1xf32>
    %c0_46 = arith.constant 0 : index
    %c0_47 = arith.constant 0 : index
    %29 = vector.load %arg24[%c0_46, %c0_47] : memref<1x128xf32, #tpu.memory_space<vmem>>, vector<1x128xf32>
    %30 = vector.extract_strided_slice %11 {offsets = [0, 0], sizes = [32, 32], strides = [1, 1]} : vector<64x32xf32> to vector<32x32xf32>
    %31 = vector.extract_strided_slice %11 {offsets = [32, 0], sizes = [32, 32], strides = [1, 1]} : vector<64x32xf32> to vector<32x32xf32>
    %32 = vector.extract_strided_slice %14 {offsets = [0, 0], sizes = [32, 32], strides = [1, 1]} : vector<64x32xf32> to vector<32x32xf32>
    %33 = vector.extract_strided_slice %14 {offsets = [32, 0], sizes = [32, 32], strides = [1, 1]} : vector<64x32xf32> to vector<32x32xf32>
    %34 = vector.extract_strided_slice %25 {offsets = [0, 0], sizes = [32, 32], strides = [1, 1]} : vector<64x32xf32> to vector<32x32xf32>
    %35 = vector.extract_strided_slice %25 {offsets = [32, 0], sizes = [32, 32], strides = [1, 1]} : vector<64x32xf32> to vector<32x32xf32>
    %c0_48 = arith.constant 0 : index
    %c0_49 = arith.constant 0 : index
    %36 = vector.load %arg1[%c0_48, %c0_49] : memref<16x32xf32, #tpu.memory_space<vmem>>, vector<16x32xf32>
    %cst = arith.constant dense<0.000000e+00> : vector<16x32xf32>
    %37 = tpu.matmul %36, %31, %cst {dimension_numbers = #tpu.dot_dimension_numbers<[1], [0], [0], [1], [0, 0, 1, 1], [], []>} : vector<16x32xf32>, vector<32x32xf32>, vector<16x32xf32> -> vector<16x32xf32>
    %c0_50 = arith.constant 0 : index
    %c0_51 = arith.constant 0 : index
    %38 = vector.load %arg28[%c0_50, %c0_51] : memref<16x32xf32, #tpu.memory_space<vmem>>, vector<16x32xf32>
    tpu.vector_store %arg28[%c0_50, %c0_51], %37 {strides = array<i32>} : memref<16x32xf32, #tpu.memory_space<vmem>>, vector<16x32xf32>,
    %c0_52 = arith.constant 0 : index
    %c0_53 = arith.constant 0 : index
    %39 = vector.load %arg2[%c0_52, %c0_53] : memref<16x32xf32, #tpu.memory_space<vmem>>, vector<16x32xf32>
    %cst_54 = arith.constant dense<0.000000e+00> : vector<16x32xf32>
    %40 = tpu.matmul %39, %33, %cst_54 {dimension_numbers = #tpu.dot_dimension_numbers<[1], [0], [0], [1], [0, 0, 1, 1], [], []>} : vector<16x32xf32>, vector<32x32xf32>, vector<16x32xf32> -> vector<16x32xf32>
    %c0_55 = arith.constant 0 : index
    %c0_56 = arith.constant 0 : index
    %41 = vector.load %arg29[%c0_55, %c0_56] : memref<16x32xf32, #tpu.memory_space<vmem>>, vector<16x32xf32>
    tpu.vector_store %arg29[%c0_55, %c0_56], %40 {strides = array<i32>} : memref<16x32xf32, #tpu.memory_space<vmem>>, vector<16x32xf32>,
    %c0_57 = arith.constant 0 : index
    %c0_58 = arith.constant 0 : index
    %42 = vector.load %arg1[%c0_57, %c0_58] : memref<16x32xf32, #tpu.memory_space<vmem>>, vector<16x32xf32>
    %cst_59 = arith.constant dense<0.000000e+00> : vector<16x32xf32>
    %43 = tpu.matmul %42, %34, %cst_59 {dimension_numbers = #tpu.dot_dimension_numbers<[1], [0], [0], [1], [0, 0, 1, 1], [], []>} : vector<16x32xf32>, vector<32x32xf32>, vector<16x32xf32> -> vector<16x32xf32>
    %c0_60 = arith.constant 0 : index
    %c0_61 = arith.constant 0 : index
    %44 = vector.load %arg30[%c0_60, %c0_61] : memref<16x32xf32, #tpu.memory_space<vmem>>, vector<16x32xf32>
    tpu.vector_store %arg30[%c0_60, %c0_61], %43 {strides = array<i32>} : memref<16x32xf32, #tpu.memory_space<vmem>>, vector<16x32xf32>,
    %cst_62 = arith.constant dense<0.000000e+00> : vector<2x32xf32>
    %45 = tpu.matmul %10, %30, %cst_62 {dimension_numbers = #tpu.dot_dimension_numbers<[1], [0], [0], [1], [0, 0, 1, 1], [], []>} : vector<2x32xf32>, vector<32x32xf32>, vector<2x32xf32> -> vector<2x32xf32>
    %cst_63 = arith.constant dense<0.000000e+00> : vector<2x32xf32>
    %46 = tpu.matmul %10, %32, %cst_63 {dimension_numbers = #tpu.dot_dimension_numbers<[1], [0], [0], [1], [0, 0, 1, 1], [], []>} : vector<2x32xf32>, vector<32x32xf32>, vector<2x32xf32> -> vector<2x32xf32>
    %47 = vector.extract_strided_slice %45 {offsets = [0, 0], sizes = [1, 32], strides = [1, 1]} : vector<2x32xf32> to vector<1x32xf32>
    %c0_64 = arith.constant 0 : index
    %c0_65 = arith.constant 0 : index
    %48 = tpu.strided_load %arg28[%c0_64, %c0_65] {strides = array<i32: 2, 1>} : memref<16x32xf32, #tpu.memory_space<vmem>>, vector<8x32xf32>
    %49 = vector.broadcast %47 : vector<1x32xf32> to vector<8x32xf32>
    %50 = arith.addf %48, %49 : vector<8x32xf32>
    %51 = vector.broadcast %12 : vector<1x32xf32> to vector<8x32xf32>
    %52 = arith.addf %50, %51 : vector<8x32xf32>
    %53 = math.tanh %52 : vector<8x32xf32>
    %54 = vector.broadcast %13 : vector<1x32xf32> to vector<8x32xf32>
    %55 = arith.mulf %53, %54 : vector<8x32xf32>
    %cst_66 = arith.constant dense<0.000000e+00> : vector<8xf32>
    %56 = vector.multi_reduction <add>, %55, %cst_66 [1] : vector<8x32xf32> to vector<8xf32>
    %57 = vector.shape_cast %56 : vector<8xf32> to vector<8x1xf32>
    %cst_67 = arith.constant dense<0xFF800000> : vector<1xf32>
    %58 = vector.multi_reduction <maximumf>, %57, %cst_67 [0] : vector<8x1xf32> to vector<1xf32>
    %59 = vector.shape_cast %58 : vector<1xf32> to vector<1x1xf32>
    %60 = vector.broadcast %59 : vector<1x1xf32> to vector<8x1xf32>
    %61 = arith.subf %57, %60 : vector<8x1xf32>
    %62 = math.exp %61 : vector<8x1xf32>
    %cst_68 = arith.constant dense<0.000000e+00> : vector<1xf32>
    %63 = vector.multi_reduction <add>, %62, %cst_68 [0] : vector<8x1xf32> to vector<1xf32>
    %64 = vector.shape_cast %63 : vector<1xf32> to vector<1x1xf32>
    %65 = tpu.reciprocal %64 {approx = true} : vector<1x1xf32> -> vector<1x1xf32>
    %66 = vector.broadcast %65 : vector<1x1xf32> to vector<8x1xf32>
    %67 = arith.mulf %62, %66 : vector<8x1xf32>
    %c0_69 = arith.constant 0 : index
    %c0_70 = arith.constant 0 : index
    %68 = tpu.strided_load %arg1[%c0_69, %c0_70] {strides = array<i32: 2, 1>} : memref<16x32xf32, #tpu.memory_space<vmem>>, vector<8x32xf32>
    %69 = vector.broadcast %67 : vector<8x1xf32> to vector<8x32xf32>
    %70 = arith.mulf %69, %68 : vector<8x32xf32>
    %cst_71 = arith.constant dense<0.000000e+00> : vector<32xf32>
    %71 = vector.multi_reduction <add>, %70, %cst_71 [0] : vector<8x32xf32> to vector<32xf32>
    %72 = vector.shape_cast %71 : vector<32xf32> to vector<1x32xf32>
    %73 = vector.extract_strided_slice %46 {offsets = [0, 0], sizes = [1, 32], strides = [1, 1]} : vector<2x32xf32> to vector<1x32xf32>
    %c0_72 = arith.constant 0 : index
    %c0_73 = arith.constant 0 : index
    %74 = tpu.strided_load %arg29[%c0_72, %c0_73] {strides = array<i32: 2, 1>} : memref<16x32xf32, #tpu.memory_space<vmem>>, vector<8x32xf32>
    %75 = vector.broadcast %73 : vector<1x32xf32> to vector<8x32xf32>
    %76 = arith.addf %74, %75 : vector<8x32xf32>
    %77 = vector.broadcast %15 : vector<1x32xf32> to vector<8x32xf32>
    %78 = arith.addf %76, %77 : vector<8x32xf32>
    %79 = math.tanh %78 : vector<8x32xf32>
    %80 = vector.broadcast %16 : vector<1x32xf32> to vector<8x32xf32>
    %81 = arith.mulf %79, %80 : vector<8x32xf32>
    %cst_74 = arith.constant dense<0.000000e+00> : vector<8xf32>
    %82 = vector.multi_reduction <add>, %81, %cst_74 [1] : vector<8x32xf32> to vector<8xf32>
    %83 = vector.shape_cast %82 : vector<8xf32> to vector<8x1xf32>
    %cst_75 = arith.constant dense<0xFF800000> : vector<1xf32>
    %84 = vector.multi_reduction <maximumf>, %83, %cst_75 [0] : vector<8x1xf32> to vector<1xf32>
    %85 = vector.shape_cast %84 : vector<1xf32> to vector<1x1xf32>
    %86 = vector.broadcast %85 : vector<1x1xf32> to vector<8x1xf32>
    %87 = arith.subf %83, %86 : vector<8x1xf32>
    %88 = math.exp %87 : vector<8x1xf32>
    %cst_76 = arith.constant dense<0.000000e+00> : vector<1xf32>
    %89 = vector.multi_reduction <add>, %88, %cst_76 [0] : vector<8x1xf32> to vector<1xf32>
    %90 = vector.shape_cast %89 : vector<1xf32> to vector<1x1xf32>
    %91 = tpu.reciprocal %90 {approx = true} : vector<1x1xf32> -> vector<1x1xf32>
    %92 = vector.broadcast %91 : vector<1x1xf32> to vector<8x1xf32>
    %93 = arith.mulf %88, %92 : vector<8x1xf32>
    %c0_77 = arith.constant 0 : index
    %c0_78 = arith.constant 0 : index
    %94 = tpu.strided_load %arg2[%c0_77, %c0_78] {strides = array<i32: 2, 1>} : memref<16x32xf32, #tpu.memory_space<vmem>>, vector<8x32xf32>
    %95 = vector.broadcast %93 : vector<8x1xf32> to vector<8x32xf32>
    %96 = arith.mulf %95, %94 : vector<8x32xf32>
    %cst_79 = arith.constant dense<0.000000e+00> : vector<32xf32>
    %97 = vector.multi_reduction <add>, %96, %cst_79 [0] : vector<8x32xf32> to vector<32xf32>
    %98 = vector.shape_cast %97 : vector<32xf32> to vector<1x32xf32>
    %99 = vector.extract_strided_slice %45 {offsets = [1, 0], sizes = [1, 32], strides = [1, 1]} : vector<2x32xf32> to vector<1x32xf32>
    %c1_80 = arith.constant 1 : index
    %c0_81 = arith.constant 0 : index
    %100 = tpu.strided_load %arg28[%c1_80, %c0_81] {strides = array<i32: 2, 1>} : memref<16x32xf32, #tpu.memory_space<vmem>>, vector<8x32xf32>
    %101 = vector.broadcast %99 : vector<1x32xf32> to vector<8x32xf32>
    %102 = arith.addf %100, %101 : vector<8x32xf32>
    %103 = vector.broadcast %12 : vector<1x32xf32> to vector<8x32xf32>
    %104 = arith.addf %102, %103 : vector<8x32xf32>
    %105 = math.tanh %104 : vector<8x32xf32>
    %106 = vector.broadcast %13 : vector<1x32xf32> to vector<8x32xf32>
    %107 = arith.mulf %105, %106 : vector<8x32xf32>
    %cst_82 = arith.constant dense<0.000000e+00> : vector<8xf32>
    %108 = vector.multi_reduction <add>, %107, %cst_82 [1] : vector<8x32xf32> to vector<8xf32>
    %109 = vector.shape_cast %108 : vector<8xf32> to vector<8x1xf32>
    %cst_83 = arith.constant dense<0xFF800000> : vector<1xf32>
    %110 = vector.multi_reduction <maximumf>, %109, %cst_83 [0] : vector<8x1xf32> to vector<1xf32>
    %111 = vector.shape_cast %110 : vector<1xf32> to vector<1x1xf32>
    %112 = vector.broadcast %111 : vector<1x1xf32> to vector<8x1xf32>
    %113 = arith.subf %109, %112 : vector<8x1xf32>
    %114 = math.exp %113 : vector<8x1xf32>
    %cst_84 = arith.constant dense<0.000000e+00> : vector<1xf32>
    %115 = vector.multi_reduction <add>, %114, %cst_84 [0] : vector<8x1xf32> to vector<1xf32>
    %116 = vector.shape_cast %115 : vector<1xf32> to vector<1x1xf32>
    %117 = tpu.reciprocal %116 {approx = true} : vector<1x1xf32> -> vector<1x1xf32>
    %118 = vector.broadcast %117 : vector<1x1xf32> to vector<8x1xf32>
    %119 = arith.mulf %114, %118 : vector<8x1xf32>
    %c1_85 = arith.constant 1 : index
    %c0_86 = arith.constant 0 : index
    %120 = tpu.strided_load %arg1[%c1_85, %c0_86] {strides = array<i32: 2, 1>} : memref<16x32xf32, #tpu.memory_space<vmem>>, vector<8x32xf32>
    %121 = vector.broadcast %119 : vector<8x1xf32> to vector<8x32xf32>
    %122 = arith.mulf %121, %120 : vector<8x32xf32>
    %cst_87 = arith.constant dense<0.000000e+00> : vector<32xf32>
    %123 = vector.multi_reduction <add>, %122, %cst_87 [0] : vector<8x32xf32> to vector<32xf32>
    %124 = vector.shape_cast %123 : vector<32xf32> to vector<1x32xf32>
    %125 = vector.extract_strided_slice %46 {offsets = [1, 0], sizes = [1, 32], strides = [1, 1]} : vector<2x32xf32> to vector<1x32xf32>
    %c1_88 = arith.constant 1 : index
    %c0_89 = arith.constant 0 : index
    %126 = tpu.strided_load %arg29[%c1_88, %c0_89] {strides = array<i32: 2, 1>} : memref<16x32xf32, #tpu.memory_space<vmem>>, vector<8x32xf32>
    %127 = vector.broadcast %125 : vector<1x32xf32> to vector<8x32xf32>
    %128 = arith.addf %126, %127 : vector<8x32xf32>
    %129 = vector.broadcast %15 : vector<1x32xf32> to vector<8x32xf32>
    %130 = arith.addf %128, %129 : vector<8x32xf32>
    %131 = math.tanh %130 : vector<8x32xf32>
    %132 = vector.broadcast %16 : vector<1x32xf32> to vector<8x32xf32>
    %133 = arith.mulf %131, %132 : vector<8x32xf32>
    %cst_90 = arith.constant dense<0.000000e+00> : vector<8xf32>
    %134 = vector.multi_reduction <add>, %133, %cst_90 [1] : vector<8x32xf32> to vector<8xf32>
    %135 = vector.shape_cast %134 : vector<8xf32> to vector<8x1xf32>
    %cst_91 = arith.constant dense<0xFF800000> : vector<1xf32>
    %136 = vector.multi_reduction <maximumf>, %135, %cst_91 [0] : vector<8x1xf32> to vector<1xf32>
    %137 = vector.shape_cast %136 : vector<1xf32> to vector<1x1xf32>
    %138 = vector.broadcast %137 : vector<1x1xf32> to vector<8x1xf32>
    %139 = arith.subf %135, %138 : vector<8x1xf32>
    %140 = math.exp %139 : vector<8x1xf32>
    %cst_92 = arith.constant dense<0.000000e+00> : vector<1xf32>
    %141 = vector.multi_reduction <add>, %140, %cst_92 [0] : vector<8x1xf32> to vector<1xf32>
    %142 = vector.shape_cast %141 : vector<1xf32> to vector<1x1xf32>
    %143 = tpu.reciprocal %142 {approx = true} : vector<1x1xf32> -> vector<1x1xf32>
    %144 = vector.broadcast %143 : vector<1x1xf32> to vector<8x1xf32>
    %145 = arith.mulf %140, %144 : vector<8x1xf32>
    %c1_93 = arith.constant 1 : index
    %c0_94 = arith.constant 0 : index
    %146 = tpu.strided_load %arg2[%c1_93, %c0_94] {strides = array<i32: 2, 1>} : memref<16x32xf32, #tpu.memory_space<vmem>>, vector<8x32xf32>
    %147 = vector.broadcast %145 : vector<8x1xf32> to vector<8x32xf32>
    %148 = arith.mulf %147, %146 : vector<8x32xf32>
    %cst_95 = arith.constant dense<0.000000e+00> : vector<32xf32>
    %149 = vector.multi_reduction <add>, %148, %cst_95 [0] : vector<8x32xf32> to vector<32xf32>
    %150 = vector.shape_cast %149 : vector<32xf32> to vector<1x32xf32>
    %151 = tpu.concatenate %72, %124 in 0 : vector<1x32xf32>, vector<1x32xf32> -> vector<2x32xf32>
    %152 = tpu.concatenate %98, %150 in 0 : vector<1x32xf32>, vector<1x32xf32> -> vector<2x32xf32>
    %c0_i32_96 = arith.constant 0 : i32
    %c0_i32_97 = arith.constant 0 : i32
    %153 = tpu.memref_slice %arg5[%0, %c0_i32_97] : memref<64x32xf32, #tpu.memory_space<any>> -> memref<1x32xf32, #tpu.memory_space<any>>
    %c0_i32_98 = arith.constant 0 : i32
    %c0_i32_99 = arith.constant 0 : i32
    %154 = tpu.memref_slice %arg27[%c0_i32_98, %c0_i32_99] : memref<2x32xf32, #tpu.memory_space<vmem>> -> memref<1x32xf32, #tpu.memory_space<vmem>>
    %155 = tpu.memref_slice %arg31[%c0_i32_96] : memref<2x!tpu.dma_semaphore, #tpu.memory_space<semaphore_mem>> -> memref<1x!tpu.dma_semaphore, #tpu.memory_space<semaphore_mem>>
    %156 = tpu.memref_squeeze %155 : memref<1x!tpu.dma_semaphore, #tpu.memory_space<semaphore_mem>> -> memref<!tpu.dma_semaphore, #tpu.memory_space<semaphore_mem>>
    tpu.wait_dma2 semaphore(%156 : memref<!tpu.dma_semaphore, #tpu.memory_space<semaphore_mem>>) src(%153 : memref<1x32xf32, #tpu.memory_space<any>>) dst(%154 : memref<1x32xf32, #tpu.memory_space<vmem>>)
    %c1_i32_100 = arith.constant 1 : i32
    %c0_i32_101 = arith.constant 0 : i32
    %157 = tpu.memref_slice %arg5[%5, %c0_i32_101] : memref<64x32xf32, #tpu.memory_space<any>> -> memref<1x32xf32, #tpu.memory_space<any>>
    %c1_i32_102 = arith.constant 1 : i32
    %c0_i32_103 = arith.constant 0 : i32
    %158 = tpu.memref_slice %arg27[%c1_i32_102, %c0_i32_103] : memref<2x32xf32, #tpu.memory_space<vmem>> -> memref<1x32xf32, #tpu.memory_space<vmem>>
    %159 = tpu.memref_slice %arg31[%c1_i32_100] : memref<2x!tpu.dma_semaphore, #tpu.memory_space<semaphore_mem>> -> memref<1x!tpu.dma_semaphore, #tpu.memory_space<semaphore_mem>>
    %160 = tpu.memref_squeeze %159 : memref<1x!tpu.dma_semaphore, #tpu.memory_space<semaphore_mem>> -> memref<!tpu.dma_semaphore, #tpu.memory_space<semaphore_mem>>
    tpu.wait_dma2 semaphore(%160 : memref<!tpu.dma_semaphore, #tpu.memory_space<semaphore_mem>>) src(%157 : memref<1x32xf32, #tpu.memory_space<any>>) dst(%158 : memref<1x32xf32, #tpu.memory_space<vmem>>)
    %c0_104 = arith.constant 0 : index
    %c0_105 = arith.constant 0 : index
    %161 = vector.load %arg27[%c0_104, %c0_105] : memref<2x32xf32, #tpu.memory_space<vmem>>, vector<2x32xf32>
    %162 = vector.extract_strided_slice %17 {offsets = [0, 0], sizes = [32, 96], strides = [1, 1]} : vector<96x96xf32> to vector<32x96xf32>
    %cst_106 = arith.constant dense<0.000000e+00> : vector<2x96xf32>
    %163 = tpu.matmul %151, %162, %cst_106 {dimension_numbers = #tpu.dot_dimension_numbers<[1], [0], [0], [1], [0, 0, 1, 1], [], []>} : vector<2x32xf32>, vector<32x96xf32>, vector<2x96xf32> -> vector<2x96xf32>
    %164 = vector.extract_strided_slice %17 {offsets = [32, 0], sizes = [32, 96], strides = [1, 1]} : vector<96x96xf32> to vector<32x96xf32>
    %cst_107 = arith.constant dense<0.000000e+00> : vector<2x96xf32>
    %165 = tpu.matmul %152, %164, %cst_107 {dimension_numbers = #tpu.dot_dimension_numbers<[1], [0], [0], [1], [0, 0, 1, 1], [], []>} : vector<2x32xf32>, vector<32x96xf32>, vector<2x96xf32> -> vector<2x96xf32>
    %166 = arith.addf %163, %165 : vector<2x96xf32>
    %167 = vector.extract_strided_slice %17 {offsets = [64, 0], sizes = [32, 96], strides = [1, 1]} : vector<96x96xf32> to vector<32x96xf32>
    %cst_108 = arith.constant dense<0.000000e+00> : vector<2x96xf32>
    %168 = tpu.matmul %161, %167, %cst_108 {dimension_numbers = #tpu.dot_dimension_numbers<[1], [0], [0], [1], [0, 0, 1, 1], [], []>} : vector<2x32xf32>, vector<32x96xf32>, vector<2x96xf32> -> vector<2x96xf32>
    %169 = arith.addf %166, %168 : vector<2x96xf32>
    %170 = vector.broadcast %19 : vector<1x96xf32> to vector<2x96xf32>
    %171 = arith.addf %169, %170 : vector<2x96xf32>
    %cst_109 = arith.constant dense<0.000000e+00> : vector<2x96xf32>
    %172 = tpu.matmul %10, %18, %cst_109 {dimension_numbers = #tpu.dot_dimension_numbers<[1], [0], [0], [1], [0, 0, 1, 1], [], []>} : vector<2x32xf32>, vector<32x96xf32>, vector<2x96xf32> -> vector<2x96xf32>
    %173 = vector.broadcast %20 : vector<1x96xf32> to vector<2x96xf32>
    %174 = arith.addf %172, %173 : vector<2x96xf32>
    %175 = vector.extract_strided_slice %171 {offsets = [0, 0], sizes = [2, 32], strides = [1, 1]} : vector<2x96xf32> to vector<2x32xf32>
    %176 = vector.extract_strided_slice %174 {offsets = [0, 0], sizes = [2, 32], strides = [1, 1]} : vector<2x96xf32> to vector<2x32xf32>
    %177 = arith.addf %175, %176 : vector<2x32xf32>
    %178 = arith.negf %177 : vector<2x32xf32>
    %179 = math.exp %178 : vector<2x32xf32>
    %cst_110 = arith.constant 1.000000e+00 : f32
    %180 = vector.broadcast %cst_110 : f32 to vector<2x32xf32>
    %181 = arith.addf %180, %179 : vector<2x32xf32>
    %182 = arith.divf %180, %181 : vector<2x32xf32>
    %183 = vector.extract_strided_slice %171 {offsets = [0, 32], sizes = [2, 32], strides = [1, 1]} : vector<2x96xf32> to vector<2x32xf32>
    %184 = vector.extract_strided_slice %174 {offsets = [0, 32], sizes = [2, 32], strides = [1, 1]} : vector<2x96xf32> to vector<2x32xf32>
    %185 = arith.addf %183, %184 : vector<2x32xf32>
    %186 = arith.negf %185 : vector<2x32xf32>
    %187 = math.exp %186 : vector<2x32xf32>
    %cst_111 = arith.constant 1.000000e+00 : f32
    %188 = vector.broadcast %cst_111 : f32 to vector<2x32xf32>
    %189 = arith.addf %188, %187 : vector<2x32xf32>
    %190 = arith.divf %188, %189 : vector<2x32xf32>
    %191 = vector.extract_strided_slice %171 {offsets = [0, 64], sizes = [2, 32], strides = [1, 1]} : vector<2x96xf32> to vector<2x32xf32>
    %192 = vector.extract_strided_slice %174 {offsets = [0, 64], sizes = [2, 32], strides = [1, 1]} : vector<2x96xf32> to vector<2x32xf32>
    %193 = arith.mulf %182, %192 : vector<2x32xf32>
    %194 = arith.addf %191, %193 : vector<2x32xf32>
    %195 = math.tanh %194 : vector<2x32xf32>
    %cst_112 = arith.constant 1.000000e+00 : f32
    %196 = vector.broadcast %cst_112 : f32 to vector<2x32xf32>
    %197 = arith.subf %196, %190 : vector<2x32xf32>
    %198 = arith.mulf %197, %195 : vector<2x32xf32>
    %199 = arith.mulf %190, %10 : vector<2x32xf32>
    %200 = arith.addf %198, %199 : vector<2x32xf32>
    %c0_113 = arith.constant 0 : index
    %c0_114 = arith.constant 0 : index
    %201 = vector.load %arg26[%c0_113, %c0_114] : memref<2x32xf32, #tpu.memory_space<vmem>>, vector<2x32xf32>
    tpu.vector_store %arg26[%c0_113, %c0_114], %200 {strides = array<i32>} : memref<2x32xf32, #tpu.memory_space<vmem>>, vector<2x32xf32>,
    %cst_115 = arith.constant dense<0.000000e+00> : vector<2xf32>
    %202 = vector.multi_reduction <add>, %200, %cst_115 [1] : vector<2x32xf32> to vector<2xf32>
    %203 = vector.shape_cast %202 : vector<2xf32> to vector<2x1xf32>
    %cst_116 = arith.constant 3.200000e+01 : f32
    %204 = vector.broadcast %cst_116 : f32 to vector<2x1xf32>
    %205 = arith.divf %203, %204 : vector<2x1xf32>
    %206 = vector.broadcast %205 : vector<2x1xf32> to vector<2x32xf32>
    %207 = arith.subf %200, %206 : vector<2x32xf32>
    %208 = arith.mulf %207, %207 : vector<2x32xf32>
    %cst_117 = arith.constant dense<0.000000e+00> : vector<2xf32>
    %209 = vector.multi_reduction <add>, %208, %cst_117 [1] : vector<2x32xf32> to vector<2xf32>
    %210 = vector.shape_cast %209 : vector<2xf32> to vector<2x1xf32>
    %cst_118 = arith.constant 3.100000e+01 : f32
    %211 = vector.broadcast %cst_118 : f32 to vector<2x1xf32>
    %212 = arith.divf %210, %211 : vector<2x1xf32>
    %213 = math.sqrt %212 : vector<2x1xf32>
    %cst_119 = arith.constant 1.000000e-03 : f32
    %214 = vector.broadcast %cst_119 : f32 to vector<2x1xf32>
    %215 = arith.addf %213, %214 : vector<2x1xf32>
    %216 = tpu.reciprocal %215 : vector<2x1xf32> -> vector<2x1xf32>
    %217 = vector.broadcast %205 : vector<2x1xf32> to vector<2x32xf32>
    %218 = arith.subf %200, %217 : vector<2x32xf32>
    %219 = vector.broadcast %216 : vector<2x1xf32> to vector<2x32xf32>
    %220 = arith.mulf %218, %219 : vector<2x32xf32>
    %221 = vector.broadcast %21 : vector<1x32xf32> to vector<2x32xf32>
    %222 = arith.mulf %220, %221 : vector<2x32xf32>
    %223 = vector.broadcast %22 : vector<1x32xf32> to vector<2x32xf32>
    %224 = arith.addf %222, %223 : vector<2x32xf32>
    %cst_120 = arith.constant dense<0.000000e+00> : vector<2x128xf32>
    %225 = tpu.matmul %224, %23, %cst_120 {dimension_numbers = #tpu.dot_dimension_numbers<[1], [0], [0], [1], [0, 0, 1, 1], [], []>} : vector<2x32xf32>, vector<32x128xf32>, vector<2x128xf32> -> vector<2x128xf32>
    %226 = vector.broadcast %24 : vector<1x128xf32> to vector<2x128xf32>
    %227 = arith.addf %225, %226 : vector<2x128xf32>
    %cst_121 = arith.constant dense<0.000000e+00> : vector<2x32xf32>
    %228 = tpu.matmul %224, %35, %cst_121 {dimension_numbers = #tpu.dot_dimension_numbers<[1], [0], [0], [1], [0, 0, 1, 1], [], []>} : vector<2x32xf32>, vector<32x32xf32>, vector<2x32xf32> -> vector<2x32xf32>
    %cst_122 = arith.constant dense<0xFF800000> : vector<2xf32>
    %229 = vector.multi_reduction <maximumf>, %227, %cst_122 [1] : vector<2x128xf32> to vector<2xf32>
    %230 = vector.shape_cast %229 : vector<2xf32> to vector<2x1xf32>
    %231 = vector.broadcast %230 : vector<2x1xf32> to vector<2x128xf32>
    %232 = arith.subf %227, %231 : vector<2x128xf32>
    %233 = math.exp %232 : vector<2x128xf32>
    %cst_123 = arith.constant dense<0.000000e+00> : vector<2xf32>
    %234 = vector.multi_reduction <add>, %233, %cst_123 [1] : vector<2x128xf32> to vector<2xf32>
    %235 = vector.shape_cast %234 : vector<2xf32> to vector<2x1xf32>
    %c0_124 = arith.constant 0 : index
    %c0_125 = arith.constant 0 : index
    %236 = tpu.strided_load %arg30[%c0_124, %c0_125] {strides = array<i32: 2, 1>} : memref<16x32xf32, #tpu.memory_space<vmem>>, vector<8x32xf32>
    %237 = vector.extract_strided_slice %228 {offsets = [0, 0], sizes = [1, 32], strides = [1, 1]} : vector<2x32xf32> to vector<1x32xf32>
    %238 = vector.broadcast %237 : vector<1x32xf32> to vector<8x32xf32>
    %239 = arith.addf %236, %238 : vector<8x32xf32>
    %240 = vector.broadcast %26 : vector<1x32xf32> to vector<8x32xf32>
    %241 = arith.addf %239, %240 : vector<8x32xf32>
    %242 = math.tanh %241 : vector<8x32xf32>
    %243 = vector.broadcast %27 : vector<1x32xf32> to vector<8x32xf32>
    %244 = arith.mulf %242, %243 : vector<8x32xf32>
    %cst_126 = arith.constant dense<0.000000e+00> : vector<8xf32>
    %245 = vector.multi_reduction <add>, %244, %cst_126 [1] : vector<8x32xf32> to vector<8xf32>
    %246 = vector.shape_cast %245 : vector<8xf32> to vector<8x1xf32>
    %247 = vector.broadcast %28 : vector<1x1xf32> to vector<8x1xf32>
    %248 = arith.addf %246, %247 : vector<8x1xf32>
    %cst_127 = arith.constant dense<0xFF800000> : vector<1xf32>
    %249 = vector.multi_reduction <maximumf>, %248, %cst_127 [0] : vector<8x1xf32> to vector<1xf32>
    %250 = vector.shape_cast %249 : vector<1xf32> to vector<1x1xf32>
    %251 = vector.extract_strided_slice %230 {offsets = [0, 0], sizes = [1, 1], strides = [1, 1]} : vector<2x1xf32> to vector<1x1xf32>
    %252 = arith.maximumf %251, %250 : vector<1x1xf32>
    %253 = vector.extract_strided_slice %230 {offsets = [0, 0], sizes = [1, 1], strides = [1, 1]} : vector<2x1xf32> to vector<1x1xf32>
    %254 = arith.subf %253, %252 : vector<1x1xf32>
    %255 = math.exp %254 : vector<1x1xf32>
    %256 = vector.broadcast %252 : vector<1x1xf32> to vector<8x1xf32>
    %257 = arith.subf %248, %256 : vector<8x1xf32>
    %258 = math.exp %257 : vector<8x1xf32>
    %259 = vector.extract_strided_slice %235 {offsets = [0, 0], sizes = [1, 1], strides = [1, 1]} : vector<2x1xf32> to vector<1x1xf32>
    %260 = arith.mulf %259, %255 : vector<1x1xf32>
    %cst_128 = arith.constant dense<0.000000e+00> : vector<1xf32>
    %261 = vector.multi_reduction <add>, %258, %cst_128 [0] : vector<8x1xf32> to vector<1xf32>
    %262 = vector.shape_cast %261 : vector<1xf32> to vector<1x1xf32>
    %263 = arith.addf %260, %262 : vector<1x1xf32>
    %264 = tpu.reciprocal %263 {approx = true} : vector<1x1xf32> -> vector<1x1xf32>
    %265 = arith.mulf %255, %264 : vector<1x1xf32>
    %266 = vector.broadcast %264 : vector<1x1xf32> to vector<8x1xf32>
    %267 = arith.mulf %258, %266 : vector<8x1xf32>
    %c0_129 = arith.constant 0 : index
    %c0_130 = arith.constant 0 : index
    %268 = tpu.strided_load %arg3[%c0_129, %c0_130] {strides = array<i32: 2, 1>} : memref<16x128xf32, #tpu.memory_space<vmem>>, vector<8x128xf32>
    %269 = vector.broadcast %267 : vector<8x1xf32> to vector<8x128xf32>
    %270 = arith.mulf %269, %268 : vector<8x128xf32>
    %cst_131 = arith.constant dense<0.000000e+00> : vector<128xf32>
    %271 = vector.multi_reduction <add>, %270, %cst_131 [0] : vector<8x128xf32> to vector<128xf32>
    %272 = vector.shape_cast %271 : vector<128xf32> to vector<1x128xf32>
    %c1_132 = arith.constant 1 : index
    %c0_133 = arith.constant 0 : index
    %273 = tpu.strided_load %arg30[%c1_132, %c0_133] {strides = array<i32: 2, 1>} : memref<16x32xf32, #tpu.memory_space<vmem>>, vector<8x32xf32>
    %274 = vector.extract_strided_slice %228 {offsets = [1, 0], sizes = [1, 32], strides = [1, 1]} : vector<2x32xf32> to vector<1x32xf32>
    %275 = vector.broadcast %274 : vector<1x32xf32> to vector<8x32xf32>
    %276 = arith.addf %273, %275 : vector<8x32xf32>
    %277 = vector.broadcast %26 : vector<1x32xf32> to vector<8x32xf32>
    %278 = arith.addf %276, %277 : vector<8x32xf32>
    %279 = math.tanh %278 : vector<8x32xf32>
    %280 = vector.broadcast %27 : vector<1x32xf32> to vector<8x32xf32>
    %281 = arith.mulf %279, %280 : vector<8x32xf32>
    %cst_134 = arith.constant dense<0.000000e+00> : vector<8xf32>
    %282 = vector.multi_reduction <add>, %281, %cst_134 [1] : vector<8x32xf32> to vector<8xf32>
    %283 = vector.shape_cast %282 : vector<8xf32> to vector<8x1xf32>
    %284 = vector.broadcast %28 : vector<1x1xf32> to vector<8x1xf32>
    %285 = arith.addf %283, %284 : vector<8x1xf32>
    %cst_135 = arith.constant dense<0xFF800000> : vector<1xf32>
    %286 = vector.multi_reduction <maximumf>, %285, %cst_135 [0] : vector<8x1xf32> to vector<1xf32>
    %287 = vector.shape_cast %286 : vector<1xf32> to vector<1x1xf32>
    %288 = vector.extract_strided_slice %230 {offsets = [1, 0], sizes = [1, 1], strides = [1, 1]} : vector<2x1xf32> to vector<1x1xf32>
    %289 = arith.maximumf %288, %287 : vector<1x1xf32>
    %290 = vector.extract_strided_slice %230 {offsets = [1, 0], sizes = [1, 1], strides = [1, 1]} : vector<2x1xf32> to vector<1x1xf32>
    %291 = arith.subf %290, %289 : vector<1x1xf32>
    %292 = math.exp %291 : vector<1x1xf32>
    %293 = vector.broadcast %289 : vector<1x1xf32> to vector<8x1xf32>
    %294 = arith.subf %285, %293 : vector<8x1xf32>
    %295 = math.exp %294 : vector<8x1xf32>
    %296 = vector.extract_strided_slice %235 {offsets = [1, 0], sizes = [1, 1], strides = [1, 1]} : vector<2x1xf32> to vector<1x1xf32>
    %297 = arith.mulf %296, %292 : vector<1x1xf32>
    %cst_136 = arith.constant dense<0.000000e+00> : vector<1xf32>
    %298 = vector.multi_reduction <add>, %295, %cst_136 [0] : vector<8x1xf32> to vector<1xf32>
    %299 = vector.shape_cast %298 : vector<1xf32> to vector<1x1xf32>
    %300 = arith.addf %297, %299 : vector<1x1xf32>
    %301 = tpu.reciprocal %300 {approx = true} : vector<1x1xf32> -> vector<1x1xf32>
    %302 = arith.mulf %292, %301 : vector<1x1xf32>
    %303 = vector.broadcast %301 : vector<1x1xf32> to vector<8x1xf32>
    %304 = arith.mulf %295, %303 : vector<8x1xf32>
    %c1_137 = arith.constant 1 : index
    %c0_138 = arith.constant 0 : index
    %305 = tpu.strided_load %arg3[%c1_137, %c0_138] {strides = array<i32: 2, 1>} : memref<16x128xf32, #tpu.memory_space<vmem>>, vector<8x128xf32>
    %306 = vector.broadcast %304 : vector<8x1xf32> to vector<8x128xf32>
    %307 = arith.mulf %306, %305 : vector<8x128xf32>
    %cst_139 = arith.constant dense<0.000000e+00> : vector<128xf32>
    %308 = vector.multi_reduction <add>, %307, %cst_139 [0] : vector<8x128xf32> to vector<128xf32>
    %309 = vector.shape_cast %308 : vector<128xf32> to vector<1x128xf32>
    %310 = tpu.concatenate %265, %302 in 0 : vector<1x1xf32>, vector<1x1xf32> -> vector<2x1xf32>
    %311 = tpu.concatenate %272, %309 in 0 : vector<1x128xf32>, vector<1x128xf32> -> vector<2x128xf32>
    %312 = vector.broadcast %310 : vector<2x1xf32> to vector<2x128xf32>
    %313 = arith.mulf %233, %312 : vector<2x128xf32>
    %cst_140 = arith.constant 1.000000e+00 : f32
    %314 = vector.broadcast %cst_140 : f32 to vector<1x128xf32>
    %315 = arith.mulf %314, %29 : vector<1x128xf32>
    %316 = vector.broadcast %315 : vector<1x128xf32> to vector<2x128xf32>
    %317 = arith.mulf %316, %311 : vector<2x128xf32>
    %318 = arith.addf %313, %317 : vector<2x128xf32>
    %c0_141 = arith.constant 0 : index
    %c0_142 = arith.constant 0 : index
    %319 = vector.load %arg25[%c0_141, %c0_142] : memref<2x128xf32, #tpu.memory_space<vmem>>, vector<2x128xf32>
    tpu.vector_store %arg25[%c0_141, %c0_142], %318 {strides = array<i32>} : memref<2x128xf32, #tpu.memory_space<vmem>>, vector<2x128xf32>,
    return
  }
}

</mosaic_0001>

<llo_original>
// kernel: tpu_custom_call.1
$region0: #{tpu_custom_call.1}
  #allocation0 [shape = 'u32[]', space=smem, size = 0x4, offset = 0x4, fixed_abs, tag = 'smem constant byte address 0x4 - core index']
  #allocation1 [shape = 'u32[144,128]{1,0:T(1,128)}', space=vmem, size = 0x12000, scoped, tag = 'internal scratch']
  #allocation2 [shape = 'f32[2,32]{1,0:T(2,128)}', space=vmem, size = 0x400, scoped, tag = 'scratch operand']
  #allocation3 [shape = 'f32[16,32]{1,0:T(8,128)}', space=vmem, size = 0x2000, scoped, tag = 'scratch operand']
  #allocation4 [shape = 'f32[16,32]{1,0:T(8,128)}', space=vmem, size = 0x2000, scoped, tag = 'scratch operand']
  #allocation5 [shape = 'f32[16,32]{1,0:T(8,128)}', space=vmem, size = 0x2000, scoped, tag = 'scratch operand']
  #allocation6 [shape = 's32[2]{0}', space=sflag, size = 0x8, scoped, tag = 'scratch operand']
  #allocation7 [shape = 'f32[1,1]{1,0:T(1,128)S(1)}', space=vmem, size = 0x200, scoped, tag = 'scoped memory for tpu_custom_call.1']
  #allocation16 [shape = 's32[]', space=sflag, size = 0x4, offset = 0, fixed_abs, tag = 'sflag constant byte address 0x0 - dummy sync flag']
  #allocation17 [shape = 's32[]', space=sflag, size = 0x4, offset = 0, fixed_abs, tag = 'sflag constant byte address 0x0 - dummy sync flag']
  %s0 = inlined_call_operand.vmem [shape: s32[1,2], index: 0, kind: input, shape index: {}]
  %s1 = inlined_call_operand.vmem [shape: f32[16,32], index: 1, kind: input, shape index: {}]
  %s2 = inlined_call_operand.vmem [shape: f32[16,32], index: 2, kind: input, shape index: {}]
  %s3 = inlined_call_operand.vmem [shape: f32[16,128], index: 3, kind: input, shape index: {}]
  %s4 = inlined_call_operand.hbm [shape: f32[2,32], index: 4, kind: input, shape index: {}, may-alias: {4,26}]
  %s5 = inlined_call_operand.vmem [shape: f32[64,32], index: 5, kind: input, shape index: {}]
  %s6 = inlined_call_operand.vmem [shape: f32[64,32], index: 6, kind: input, shape index: {}]
  %s7 = inlined_call_operand.vmem [shape: f32[1,32], index: 7, kind: input, shape index: {}]
  %s8 = inlined_call_operand.vmem [shape: f32[1,32], index: 8, kind: input, shape index: {}]
  %s9 = inlined_call_operand.vmem [shape: f32[64,32], index: 9, kind: input, shape index: {}]
  %s10 = inlined_call_operand.vmem [shape: f32[1,32], index: 10, kind: input, shape index: {}]
  %s11 = inlined_call_operand.vmem [shape: f32[1,32], index: 11, kind: input, shape index: {}]
  %s12 = inlined_call_operand.vmem [shape: f32[96,96], index: 12, kind: input, shape index: {}]
  %s13 = inlined_call_operand.vmem [shape: f32[32,96], index: 13, kind: input, shape index: {}]
  %s14 = inlined_call_operand.vmem [shape: f32[1,96], index: 14, kind: input, shape index: {}]
  %s15 = inlined_call_operand.vmem [shape: f32[1,96], index: 15, kind: input, shape index: {}]
  %s16 = inlined_call_operand.vmem [shape: f32[1,32], index: 16, kind: input, shape index: {}]
  %s17 = inlined_call_operand.vmem [shape: f32[1,32], index: 17, kind: input, shape index: {}]
  %s18 = inlined_call_operand.vmem [shape: f32[32,128], index: 18, kind: input, shape index: {}]
  %s19 = inlined_call_operand.vmem [shape: f32[1,128], index: 19, kind: input, shape index: {}]
  %s20 = inlined_call_operand.vmem [shape: f32[64,32], index: 20, kind: input, shape index: {}]
  %s21 = inlined_call_operand.vmem [shape: f32[1,32], index: 21, kind: input, shape index: {}]
  %s22 = inlined_call_operand.vmem [shape: f32[1,32], index: 22, kind: input, shape index: {}]
  %s23 = inlined_call_operand.<no memory space> [shape: f32[1,1], index: 23, kind: input, shape index: {}]
  %s24 = inlined_call_operand.vmem [shape: f32[1,128], index: 24, kind: input, shape index: {}]
  %s25 = inlined_call_operand.hbm [shape: f32[2,128], index: 25, kind: output, shape index: {0}]
  %s26 = inlined_call_operand.hbm [shape: f32[2,32], index: 26, kind: output, shape index: {1}, may-alias: {4,26}]
  %27 = xla_tuple %s25, %s26
  %s28 = sld [smem:[#allocation0]]
  $region182: #{tpu_custom_call.1} parent=0
    _
  %s30 = ssub.s32 1, %s28
  %s31 = scalar_select 0, %s30, %s28
  %v32 = vstv %s23
  %33 = vst [vmem:[#allocation7] sm:$0x1] %v32
  $region1: #{tpu_custom_call.1} parent=0
    #allocation8 [shape = 'u8[512]{0}', space=smem, size = 0x200, scoped, tag = 'input window, operand 0, single buffered']
    #allocation9 [shape = 's32[1]{0}', space=sflag, size = 0x4, scoped, tag = 'scoped memory for tpu_custom_call.1']
    #allocation10 [shape = 's32[1]{0}', space=sflag, size = 0x4, scoped, tag = 'scoped memory for tpu_custom_call.1']
    #allocation11 [shape = 's32[1]{0}', space=sflag, size = 0x4, scoped, tag = 'scoped memory for tpu_custom_call.1']
    #allocation12 [shape = 'u8[1024]{0}', space=vmem, size = 0x400, scoped, tag = 'input window, operand 4, single buffered']
    #allocation13 [shape = 'u8[1024]{0}', space=vmem, size = 0x400, scoped, tag = 'output window, operand 0, single buffered']
    #allocation14 [shape = 'u8[1024]{0}', space=vmem, size = 0x400, scoped, tag = 'output window, operand 1, single buffered']
    #allocation15 [shape = 's32[1]{0}', space=sflag, size = 0x4, scoped, tag = 'scoped memory for tpu_custom_call.1']
    %34 = vsyncpa [#allocation11], 0
    %35 = vsyncpa [#allocation9], 0
    %36 = vsyncpa [#allocation10], 0
    %37 = vsyncpa [#allocation15], 0
    // Predicated region
    $region2: #{tpu_custom_call.1} parent=1 // pred_check
      _
    $region3: #{tpu_custom_call.1} parent=1 // pred_check_branch
      %39 = sbr.rel (0) target = $region5
    $region4: #{tpu_custom_call.1} parent=1 // pred_region
      %s41 = ssub.s32 16, 16
      %42 = vsyncadd [#allocation11], %s41
      %s44 = sshll.u32 %s0, 4
      %s45 = int_to_ptr.vmem [resolvable:$true] %s44
      %47 = dma.vmem_to_smem %s45, 16, [#allocation8], [#allocation11]
    $region5: #{tpu_custom_call.1} parent=1 // pred_fallthru
      _
    // Predicated region
    $region6: #{tpu_custom_call.1} parent=1 // pred_check
      _
    $region7: #{tpu_custom_call.1} parent=1 // pred_check_branch
      %49 = sbr.rel (0) target = $region9
    $region8: #{tpu_custom_call.1} parent=1 // pred_region
      _
    $region9: #{tpu_custom_call.1} parent=1 // pred_fallthru
      _
    // Predicated region
    $region10: #{tpu_custom_call.1} parent=1 // pred_check
      _
    $region11: #{tpu_custom_call.1} parent=1 // pred_check_branch
      %51 = sbr.rel (0) target = $region13
    $region12: #{tpu_custom_call.1} parent=1 // pred_region
      _
    $region13: #{tpu_custom_call.1} parent=1 // pred_fallthru
      _
    // Predicated region
    $region14: #{tpu_custom_call.1} parent=1 // pred_check
      _
    $region15: #{tpu_custom_call.1} parent=1 // pred_check_branch
      %53 = sbr.rel (0) target = $region17
    $region16: #{tpu_custom_call.1} parent=1 // pred_region
      _
    $region17: #{tpu_custom_call.1} parent=1 // pred_fallthru
      _
    // Predicated region
    $region18: #{tpu_custom_call.1} parent=1 // pred_check
      _
    $region19: #{tpu_custom_call.1} parent=1 // pred_check_branch
      %55 = sbr.rel (0) target = $region21
    $region20: #{tpu_custom_call.1} parent=1 // pred_region
      %s57 = ssub.s32 32, 32
      %58 = vsyncadd [#allocation9], %s57
      %s60 = sshll.u32 [#allocation12], 4
      %s61 = int_to_ptr.vmem [resolvable:$true] %s60
      %63 = dma.hbm_to_vmem [thread:$0]  %s4, 32, %s61, [#allocation9]
    $region21: #{tpu_custom_call.1} parent=1 // pred_fallthru
      _
    // Predicated region
    $region22: #{tpu_custom_call.1} parent=1 // pred_check
      _
    $region23: #{tpu_custom_call.1} parent=1 // pred_check_branch
      %65 = sbr.rel (0) target = $region25
    $region24: #{tpu_custom_call.1} parent=1 // pred_region
      _
    $region25: #{tpu_custom_call.1} parent=1 // pred_fallthru
      _
    // Predicated region
    $region26: #{tpu_custom_call.1} parent=1 // pred_check
      _
    $region27: #{tpu_custom_call.1} parent=1 // pred_check_branch
      %67 = sbr.rel (0) target = $region29
    $region28: #{tpu_custom_call.1} parent=1 // pred_region
      _
    $region29: #{tpu_custom_call.1} parent=1 // pred_fallthru
      _
    // Predicated region
    $region30: #{tpu_custom_call.1} parent=1 // pred_check
      _
    $region31: #{tpu_custom_call.1} parent=1 // pred_check_branch
      %69 = sbr.rel (0) target = $region33
    $region32: #{tpu_custom_call.1} parent=1 // pred_region
      _
    $region33: #{tpu_custom_call.1} parent=1 // pred_fallthru
      _
    // Predicated region
    $region34: #{tpu_custom_call.1} parent=1 // pred_check
      _
    $region35: #{tpu_custom_call.1} parent=1 // pred_check_branch
      %71 = sbr.rel (0) target = $region37
    $region36: #{tpu_custom_call.1} parent=1 // pred_region
      _
    $region37: #{tpu_custom_call.1} parent=1 // pred_fallthru
      _
    // Predicated region
    $region38: #{tpu_custom_call.1} parent=1 // pred_check
      _
    $region39: #{tpu_custom_call.1} parent=1 // pred_check_branch
      %73 = sbr.rel (0) target = $region41
    $region40: #{tpu_custom_call.1} parent=1 // pred_region
      _
    $region41: #{tpu_custom_call.1} parent=1 // pred_fallthru
      _
    // Predicated region
    $region42: #{tpu_custom_call.1} parent=1 // pred_check
      _
    $region43: #{tpu_custom_call.1} parent=1 // pred_check_branch
      %75 = sbr.rel (0) target = $region45
    $region44: #{tpu_custom_call.1} parent=1 // pred_region
      _
    $region45: #{tpu_custom_call.1} parent=1 // pred_fallthru
      _
    // Predicated region
    $region46: #{tpu_custom_call.1} parent=1 // pred_check
      _
    $region47: #{tpu_custom_call.1} parent=1 // pred_check_branch
      %77 = sbr.rel (0) target = $region49
    $region48: #{tpu_custom_call.1} parent=1 // pred_region
      _
    $region49: #{tpu_custom_call.1} parent=1 // pred_fallthru
      _
    // Predicated region
    $region50: #{tpu_custom_call.1} parent=1 // pred_check
      _
    $region51: #{tpu_custom_call.1} parent=1 // pred_check_branch
      %79 = sbr.rel (0) target = $region53
    $region52: #{tpu_custom_call.1} parent=1 // pred_region
      _
    $region53: #{tpu_custom_call.1} parent=1 // pred_fallthru
      _
    // Predicated region
    $region54: #{tpu_custom_call.1} parent=1 // pred_check
      _
    $region55: #{tpu_custom_call.1} parent=1 // pred_check_branch
      %81 = sbr.rel (0) target = $region57
    $region56: #{tpu_custom_call.1} parent=1 // pred_region
      _
    $region57: #{tpu_custom_call.1} parent=1 // pred_fallthru
      _
    // Predicated region
    $region58: #{tpu_custom_call.1} parent=1 // pred_check
      _
    $region59: #{tpu_custom_call.1} parent=1 // pred_check_branch
      %83 = sbr.rel (0) target = $region61
    $region60: #{tpu_custom_call.1} parent=1 // pred_region
      _
    $region61: #{tpu_custom_call.1} parent=1 // pred_fallthru
      _
    // Predicated region
    $region62: #{tpu_custom_call.1} parent=1 // pred_check
      _
    $region63: #{tpu_custom_call.1} parent=1 // pred_check_branch
      %85 = sbr.rel (0) target = $region65
    $region64: #{tpu_custom_call.1} parent=1 // pred_region
      _
    $region65: #{tpu_custom_call.1} parent=1 // pred_fallthru
      _
    // Predicated region
    $region66: #{tpu_custom_call.1} parent=1 // pred_check
      _
    $region67: #{tpu_custom_call.1} parent=1 // pred_check_branch
      %87 = sbr.rel (0) target = $region69
    $region68: #{tpu_custom_call.1} parent=1 // pred_region
      _
    $region69: #{tpu_custom_call.1} parent=1 // pred_fallthru
      _
    // Predicated region
    $region70: #{tpu_custom_call.1} parent=1 // pred_check
      _
    $region71: #{tpu_custom_call.1} parent=1 // pred_check_branch
      %89 = sbr.rel (0) target = $region73
    $region72: #{tpu_custom_call.1} parent=1 // pred_region
      _
    $region73: #{tpu_custom_call.1} parent=1 // pred_fallthru
      _
    // Predicated region
    $region74: #{tpu_custom_call.1} parent=1 // pred_check
      _
    $region75: #{tpu_custom_call.1} parent=1 // pred_check_branch
      %91 = sbr.rel (0) target = $region77
    $region76: #{tpu_custom_call.1} parent=1 // pred_region
      _
    $region77: #{tpu_custom_call.1} parent=1 // pred_fallthru
      _
    // Predicated region
    $region78: #{tpu_custom_call.1} parent=1 // pred_check
      _
    $region79: #{tpu_custom_call.1} parent=1 // pred_check_branch
      %93 = sbr.rel (0) target = $region81
    $region80: #{tpu_custom_call.1} parent=1 // pred_region
      _
    $region81: #{tpu_custom_call.1} parent=1 // pred_fallthru
      _
    // Predicated region
    $region82: #{tpu_custom_call.1} parent=1 // pred_check
      _
    $region83: #{tpu_custom_call.1} parent=1 // pred_check_branch
      %95 = sbr.rel (0) target = $region85
    $region84: #{tpu_custom_call.1} parent=1 // pred_region
      _
    $region85: #{tpu_custom_call.1} parent=1 // pred_fallthru
      _
    // Predicated region
    $region86: #{tpu_custom_call.1} parent=1 // pred_check
      _
    $region87: #{tpu_custom_call.1} parent=1 // pred_check_branch
      %97 = sbr.rel (0) target = $region89
    $region88: #{tpu_custom_call.1} parent=1 // pred_region
      _
    $region89: #{tpu_custom_call.1} parent=1 // pred_fallthru
      _
    // Predicated region
    $region90: #{tpu_custom_call.1} parent=1 // pred_check
      _
    $region91: #{tpu_custom_call.1} parent=1 // pred_check_branch
      %99 = sbr.rel (0) target = $region93
    $region92: #{tpu_custom_call.1} parent=1 // pred_region
      _
    $region93: #{tpu_custom_call.1} parent=1 // pred_fallthru
      _
    // Predicated region
    $region94: #{tpu_custom_call.1} parent=1 // pred_check
      _
    $region95: #{tpu_custom_call.1} parent=1 // pred_check_branch
      %101 = sbr.rel (0) target = $region97
    $region96: #{tpu_custom_call.1} parent=1 // pred_region
      _
    $region97: #{tpu_custom_call.1} parent=1 // pred_fallthru
      _
    // Predicated region
    $region98: #{tpu_custom_call.1} parent=1 // pred_check
      _
    $region99: #{tpu_custom_call.1} parent=1 // pred_check_branch
      %103 = sbr.rel (0) target = $region101
    $region100: #{tpu_custom_call.1} parent=1 // pred_region
      %104 = dma.done [#allocation11], 16
    $region101: #{tpu_custom_call.1} parent=1 // pred_fallthru
      _
    // Predicated region
    $region102: #{tpu_custom_call.1} parent=1 // pred_check
      _
    $region103: #{tpu_custom_call.1} parent=1 // pred_check_branch
      %106 = sbr.rel (0) target = $region105
    $region104: #{tpu_custom_call.1} parent=1 // pred_region
      %107 = dma.done [#allocation9], 32
    $region105: #{tpu_custom_call.1} parent=1 // pred_fallthru
      _
    %108 = sfence
    %s109 = sld [smem:[#allocation8]]
    %s110 = scalar_lea.vmem %s5, %s109
    %p112 = scmp.lt.u32.totalorder 1, 8
    %p113 = pneg %p112
    // Predicated region
    $region106: #{tpu_custom_call.1} parent=1 // pred_check
      _
    $region107: #{tpu_custom_call.1} parent=1 // pred_check_branch
      %115 = sbr.rel (%p112) target = $region109
    $region108: #{tpu_custom_call.1} parent=1 // pred_region
      %s130 = sand.u32 1, 7
      %p131 = scmp.eq.s32.totalorder %s130, 0
      %p132 = pneg %p131
      // Predicated region
      $region121: #{tpu_custom_call.1} parent=108 // pred_check
        _
      $region122: #{tpu_custom_call.1} parent=108 // pred_check_branch
        %134 = sbr.rel (%p131) target = $region124
      $region123: #{tpu_custom_call.1} parent=108 // pred_region
        %s135 = sand.u32 1, 7
        %s136 = ssub.s32 1, %s135
        %s137 = scalar_lea.vmem %s110, %s136
        %s138 = ssub.s32 1, %s135
        %s139 = scalar_lea.vmem [#allocation2], %s138
        %s140 = sshllo.u32 0, %s135
        loop: start=0, step=1, limit=1
        $region125: #{tpu_custom_call.1} parent=123 // loop_pre_header
          _
        $region126: #{tpu_custom_call.1} parent=123 // loop_header
          %s142 = sphi 0, %s146
          %p143 = scmp.ge.s32.totalorder %s142, 1
          %s147 = sphi %s137, %s137
          %s148 = sphi %s139, %s139
        $region127: #{tpu_custom_call.1} parent=123 // loop_header_branch
          %145 = sbr.rel (%p143) target = $region131
        $region128: #{tpu_custom_call.1} parent=123 // loop_body
          %v149 = vld [vmem:[%s147] sm:%s140]
          %150 = vst [vmem:[%s148] sm:%s140] %v149
        $region129: #{tpu_custom_call.1} parent=123 // loop_footer
          %s146 = sadd.s32 1, %s142
        $region130: #{tpu_custom_call.1} parent=123 // loop_footer_branch
          %141 = sbr.rel target = $region126
        $region131: #{tpu_custom_call.1} parent=123 // loop_exit
          _
      $region124: #{tpu_custom_call.1} parent=108 // pred_fallthru
        _
    $region109: #{tpu_custom_call.1} parent=1 // pred_fallthru
      _
    // Predicated region
    $region110: #{tpu_custom_call.1} parent=1 // pred_check
      %p116 = pneg %p112
    $region111: #{tpu_custom_call.1} parent=1 // pred_check_branch
      %118 = sbr.rel (%p116) target = $region113
    $region112: #{tpu_custom_call.1} parent=1 // pred_region
      %s119 = sshllo.u32 0, 1
      loop: start=0, step=1, limit=1
      $region114: #{tpu_custom_call.1} parent=112 // loop_pre_header
        _
      $region115: #{tpu_custom_call.1} parent=112 // loop_header
        %s121 = sphi 0, %s125
        %p122 = scmp.ge.s32.totalorder %s121, 1
        %s126 = sphi %s110, %s110
        %s127 = sphi [#allocation2], [#allocation2]
      $region116: #{tpu_custom_call.1} parent=112 // loop_header_branch
        %124 = sbr.rel (%p122) target = $region120
      $region117: #{tpu_custom_call.1} parent=112 // loop_body
        %v128 = vld [vmem:[%s126] sm:%s119]
        %129 = vst [vmem:[%s127] sm:%s119] %v128
      $region118: #{tpu_custom_call.1} parent=112 // loop_footer
        %s125 = sadd.s32 1, %s121
      $region119: #{tpu_custom_call.1} parent=112 // loop_footer_branch
        %120 = sbr.rel target = $region115
      $region120: #{tpu_custom_call.1} parent=112 // loop_exit
        _
    $region113: #{tpu_custom_call.1} parent=1 // pred_fallthru
      _
    // Predicated region
    $region132: #{tpu_custom_call.1} parent=1 // pred_check
      _
    $region133: #{tpu_custom_call.1} parent=1 // pred_check_branch
      %153 = sbr.rel (0) target = $region135
    $region134: #{tpu_custom_call.1} parent=1 // pred_region
      %154 = vsyncadd [#allocation6], 16
    $region135: #{tpu_custom_call.1} parent=1 // pred_fallthru
      _
    %s155 = sld [smem:[#allocation8 + $0x1]]
    %s156 = scalar_lea.vmem %s5, %s155
    %s157 = scalar_lea.vmem [#allocation2], 1
    %s158 = scalar_lea.sflag [#allocation6], 1
    %p160 = scmp.lt.u32.totalorder 1, 8
    %p161 = pneg %p160
    // Predicated region
    $region136: #{tpu_custom_call.1} parent=1 // pred_check
      _
    $region137: #{tpu_custom_call.1} parent=1 // pred_check_branch
      %163 = sbr.rel (%p160) target = $region139
    $region138: #{tpu_custom_call.1} parent=1 // pred_region
      %s178 = sand.u32 1, 7
      %p179 = scmp.eq.s32.totalorder %s178, 0
      %p180 = pneg %p179
      // Predicated region
      $region151: #{tpu_custom_call.1} parent=138 // pred_check
        _
      $region152: #{tpu_custom_call.1} parent=138 // pred_check_branch
        %182 = sbr.rel (%p179) target = $region154
      $region153: #{tpu_custom_call.1} parent=138 // pred_region
        %s183 = sand.u32 1, 7
        %s184 = ssub.s32 1, %s183
        %s185 = scalar_lea.vmem %s156, %s184
        %s186 = ssub.s32 1, %s183
        %s187 = scalar_lea.vmem %s157, %s186 [#allocation2]
        %s188 = sshllo.u32 0, %s183
        loop: start=0, step=1, limit=1
        $region155: #{tpu_custom_call.1} parent=153 // loop_pre_header
          _
        $region156: #{tpu_custom_call.1} parent=153 // loop_header
          %s190 = sphi 0, %s194
          %p191 = scmp.ge.s32.totalorder %s190, 1
          %s195 = sphi %s185, %s185
          %s196 = sphi %s187, %s187
        $region157: #{tpu_custom_call.1} parent=153 // loop_header_branch
          %193 = sbr.rel (%p191) target = $region161
        $region158: #{tpu_custom_call.1} parent=153 // loop_body
          %v197 = vld [vmem:[%s195] sm:%s188]
          %198 = vst [vmem:[%s196] sm:%s188] %v197
        $region159: #{tpu_custom_call.1} parent=153 // loop_footer
          %s194 = sadd.s32 1, %s190
        $region160: #{tpu_custom_call.1} parent=153 // loop_footer_branch
          %189 = sbr.rel target = $region156
        $region161: #{tpu_custom_call.1} parent=153 // loop_exit
          _
      $region154: #{tpu_custom_call.1} parent=138 // pred_fallthru
        _
    $region139: #{tpu_custom_call.1} parent=1 // pred_fallthru
      _
    // Predicated region
    $region140: #{tpu_custom_call.1} parent=1 // pred_check
      %p164 = pneg %p160
    $region141: #{tpu_custom_call.1} parent=1 // pred_check_branch
      %166 = sbr.rel (%p164) target = $region143
    $region142: #{tpu_custom_call.1} parent=1 // pred_region
      %s167 = sshllo.u32 0, 1
      loop: start=0, step=1, limit=1
      $region144: #{tpu_custom_call.1} parent=142 // loop_pre_header
        _
      $region145: #{tpu_custom_call.1} parent=142 // loop_header
        %s169 = sphi 0, %s173
        %p170 = scmp.ge.s32.totalorder %s169, 1
        %s174 = sphi %s156, %s156
        %s175 = sphi %s157, %s157
      $region146: #{tpu_custom_call.1} parent=142 // loop_header_branch
        %172 = sbr.rel (%p170) target = $region150
      $region147: #{tpu_custom_call.1} parent=142 // loop_body
        %v176 = vld [vmem:[%s174] sm:%s167]
        %177 = vst [vmem:[%s175] sm:%s167] %v176
      $region148: #{tpu_custom_call.1} parent=142 // loop_footer
        %s173 = sadd.s32 1, %s169
      $region149: #{tpu_custom_call.1} parent=142 // loop_footer_branch
        %168 = sbr.rel target = $region145
      $region150: #{tpu_custom_call.1} parent=142 // loop_exit
        _
    $region143: #{tpu_custom_call.1} parent=1 // pred_fallthru
      _
    // Predicated region
    $region162: #{tpu_custom_call.1} parent=1 // pred_check
      _
    $region163: #{tpu_custom_call.1} parent=1 // pred_check_branch
      %201 = sbr.rel (0) target = $region165
    $region164: #{tpu_custom_call.1} parent=1 // pred_region
      %202 = vsyncadd %s158, 16
    $region165: #{tpu_custom_call.1} parent=1 // pred_fallthru
      _
    %v203 = vld [vmem:[#allocation12] sm:$0x3]
    %v204 = vld [vmem:[%s6] sm:$0xff]
    %v205 = vld [vmem:[%s6 + $0x8] sm:$0xff]
    %v206 = vld [vmem:[%s6 + $0x10] sm:$0xff]
    %v207 = vld [vmem:[%s6 + $0x18] sm:$0xff]
    %v208 = vld [vmem:[%s6 + $0x20] sm:$0xff]
    %v209 = vld [vmem:[%s6 + $0x28] sm:$0xff]
    %v210 = vld [vmem:[%s6 + $0x30] sm:$0xff]
    %v211 = vld [vmem:[%s6 + $0x38] sm:$0xff]
    %v212 = vld [vmem:[%s7] sm:$0x1]
    %v213 = vld [vmem:[%s8] sm:$0x1]
    %v214 = vld [vmem:[%s9] sm:$0xff]
    %v215 = vld [vmem:[%s9 + $0x8] sm:$0xff]
    %v216 = vld [vmem:[%s9 + $0x10] sm:$0xff]
    %v217 = vld [vmem:[%s9 + $0x18] sm:$0xff]
    %v218 = vld [vmem:[%s9 + $0x20] sm:$0xff]
    %v219 = vld [vmem:[%s9 + $0x28] sm:$0xff]
    %v220 = vld [vmem:[%s9 + $0x30] sm:$0xff]
    %v221 = vld [vmem:[%s9 + $0x38] sm:$0xff]
    %v222 = vld [vmem:[%s10] sm:$0x1]
    %v223 = vld [vmem:[%s11] sm:$0x1]
    %v224 = vld [vmem:[%s12] sm:$0xff]
    %v225 = vld [vmem:[%s12 + $0x8] sm:$0xff]
    %v226 = vld [vmem:[%s12 + $0x10] sm:$0xff]
    %v227 = vld [vmem:[%s12 + $0x18] sm:$0xff]
    %v228 = vld [vmem:[%s12 + $0x20] sm:$0xff]
    %v229 = vld [vmem:[%s12 + $0x28] sm:$0xff]
    %v230 = vld [vmem:[%s12 + $0x30] sm:$0xff]
    %v231 = vld [vmem:[%s12 + $0x38] sm:$0xff]
    %v232 = vld [vmem:[%s12 + $0x40] sm:$0xff]
    %v233 = vld [vmem:[%s12 + $0x48] sm:$0xff]
    %v234 = vld [vmem:[%s12 + $0x50] sm:$0xff]
    %v235 = vld [vmem:[%s12 + $0x58] sm:$0xff]
    %v236 = vld [vmem:[%s13] sm:$0xff]
    %v237 = vld [vmem:[%s13 + $0x8] sm:$0xff]
    %v238 = vld [vmem:[%s13 + $0x10] sm:$0xff]
    %v239 = vld [vmem:[%s13 + $0x18] sm:$0xff]
    %v240 = vld [vmem:[%s14] sm:$0x1]
    %v241 = vld [vmem:[%s15] sm:$0x1]
    %v242 = vld [vmem:[%s16] sm:$0x1]
    %v243 = vld [vmem:[%s17] sm:$0x1]
    %v244 = vld [vmem:[%s18] sm:$0xff]
    %v245 = vld [vmem:[%s18 + $0x8] sm:$0xff]
    %v246 = vld [vmem:[%s18 + $0x10] sm:$0xff]
    %v247 = vld [vmem:[%s18 + $0x18] sm:$0xff]
    %v248 = vld [vmem:[%s19] sm:$0x1]
    %v249 = vld [vmem:[%s20] sm:$0xff]
    %v250 = vld [vmem:[%s20 + $0x8] sm:$0xff]
    %v251 = vld [vmem:[%s20 + $0x10] sm:$0xff]
    %v252 = vld [vmem:[%s20 + $0x18] sm:$0xff]
    %v253 = vld [vmem:[%s20 + $0x20] sm:$0xff]
    %v254 = vld [vmem:[%s20 + $0x28] sm:$0xff]
    %v255 = vld [vmem:[%s20 + $0x30] sm:$0xff]
    %v256 = vld [vmem:[%s20 + $0x38] sm:$0xff]
    %v257 = vld [vmem:[%s21] sm:$0x1]
    %v258 = vld [vmem:[%s22] sm:$0x1]
    %v259 = vld [vmem:[#allocation7] sm:$0x1]
    %v260 = vld [vmem:[%s24] sm:$0x1]
    %v261 = vld [vmem:[%s1] sm:$0xff]
    %v262 = vld [vmem:[%s1 + $0x8] sm:$0xff]
    %vm263 = vcmask 261120
    %v265 = vsel %vm263, %v261, 0
    %v268 = vsel %vm263, %v262, 0
    %270 = vmatprep.subr.mxu0 0.0
    %271 = vmatpush1.msra.mxu0 %v208
    %272 = vmatprep.subr.mxu0 0.0
    %273 = vmatpush1.msra.mxu0 %v209
    %274 = vmatprep.subr.mxu0 0.0
    %275 = vmatpush1.msra.mxu0 %v210
    %276 = vmatprep.subr.mxu0 0.0
    %277 = vmatpush1.msra.mxu0 %v211
    %278 = vmatprep.subr.mxu0 0.0
    %279 = vmatpush1.msra.mxu0 0.0
    %280 = vmatprep.subr.mxu0 0.0
    %281 = vmatpush1.msra.mxu0 0.0
    %282 = vmatprep.subr.mxu0 0.0
    %283 = vmatpush1.msra.mxu0 0.0
    %284 = vmatprep.subr.mxu0 0.0
    %285 = vmatpush1.msra.mxu0 0.0
    %286 = vmatprep.subr.mxu0 0.0
    %287 = vmatpush1.msra.mxu0 0.0
    %288 = vmatprep.subr.mxu0 0.0
    %289 = vmatpush1.msra.mxu0 0.0
    %290 = vmatprep.subr.mxu0 0.0
    %291 = vmatpush1.msra.mxu0 0.0
    %292 = vmatprep.subr.mxu0 0.0
    %293 = vmatpush1.msra.mxu0 0.0
    %294 = vmatprep.subr.mxu0 0.0
    %295 = vmatpush1.msra.mxu0 0.0
    %296 = vmatprep.subr.mxu0 0.0
    %297 = vmatpush1.msra.mxu0 0.0
    %298 = vmatprep.subr.mxu0 0.0
    %299 = vmatpush1.msra.mxu0 0.0
    %300 = vmatprep.subr.mxu0 0.0
    %301 = vmatpush1.msra.mxu0 0.0
    %302 = vmatprep.subr.mxu0 0.0
    %303 = vmatpush1.msra.mxu0 0.0
    %304 = vmatprep.subr.mxu0 0.0
    %305 = vmatpush1.msra.mxu0 0.0
    %306 = vmatprep.subr.mxu0 0.0
    %307 = vmatpush1.msra.mxu0 0.0
    %308 = vmatprep.subr.mxu0 0.0
    %309 = vmatpush1.msra.mxu0 0.0
    %310 = vmatprep.subr.mxu0 0.0
    %311 = vmatpush1.msra.mxu0 0.0
    %312 = vmatprep.subr.mxu0 0.0
    %313 = vmatpush1.msra.mxu0 0.0
    %314 = vmatprep.subr.mxu0 0.0
    %315 = vmatpush1.msra.mxu0 0.0
    %316 = vmatprep.subr.mxu0 0.0
    %317 = vmatpush1.msra.mxu0 0.0
    %318 = vmatprep.subr.mxu0 0.0
    %319 = vmatpush1.msra.mxu0 0.0
    %320 = vmatprep.subr.mxu0 0.0
    %321 = vmatpush1.msra.mxu0 0.0
    %322 = vmatprep.subr.mxu0 0.0
    %323 = vmatpush1.msra.mxu0 0.0
    %324 = vmatprep.subr.mxu0 0.0
    %325 = vmatpush1.msra.mxu0 0.0
    %326 = vmatprep.subr.mxu0 0.0
    %327 = vmatpush1.msra.mxu0 0.0
    %328 = vmatprep.subr.mxu0 0.0
    %329 = vmatpush1.msra.mxu0 0.0
    %330 = vmatprep.subr.mxu0 0.0
    %331 = vmatpush1.msra.mxu0 0.0
    %332 = vmatprep.subr.mxu0 0.0
    %333 = vmatpush1.msra.mxu0 0.0
    %334 = vmatprep.mubr.f32.mxu0 0.0
    %335 = vmatmul.mubr.f32.gmra.mrb[0].mxu0 %v265
    %v336 = vpop.f32.mrb[0].mxu0
    %v337 = vadd.f32 0.0, %v336
    %v338 = vpop.f32.mrb[0].mxu0
    %339 = vmatprep.mubr.f32.mxu0 0.0
    %340 = vmatmul.mubr.f32.gmra.mrb[0].mxu0 %v268
    %v341 = vpop.f32.mrb[0].mxu0
    %v342 = vadd.f32 0.0, %v341
    %v343 = vpop.f32.mrb[0].mxu0
    %344 = vdwg.mxu0
    %345 = vst.msk [vmem:[#allocation3] sm:$0xff] %vm263, %v337
    %346 = vst.msk [vmem:[#allocation3 + $0x8] sm:$0xff] %vm263, %v342
    %v347 = vld [vmem:[%s2] sm:$0xff]
    %v348 = vld [vmem:[%s2 + $0x8] sm:$0xff]
    %v350 = vsel %vm263, %v347, 0
    %v353 = vsel %vm263, %v348, 0
    %355 = vmatprep.subr.mxu0 0.0
    %356 = vmatpush1.msra.mxu0 %v218
    %357 = vmatprep.subr.mxu0 0.0
    %358 = vmatpush1.msra.mxu0 %v219
    %359 = vmatprep.subr.mxu0 0.0
    %360 = vmatpush1.msra.mxu0 %v220
    %361 = vmatprep.subr.mxu0 0.0
    %362 = vmatpush1.msra.mxu0 %v221
    %363 = vmatprep.subr.mxu0 0.0
    %364 = vmatpush1.msra.mxu0 0.0
    %365 = vmatprep.subr.mxu0 0.0
    %366 = vmatpush1.msra.mxu0 0.0
    %367 = vmatprep.subr.mxu0 0.0
    %368 = vmatpush1.msra.mxu0 0.0
    %369 = vmatprep.subr.mxu0 0.0
    %370 = vmatpush1.msra.mxu0 0.0
    %371 = vmatprep.subr.mxu0 0.0
    %372 = vmatpush1.msra.mxu0 0.0
    %373 = vmatprep.subr.mxu0 0.0
    %374 = vmatpush1.msra.mxu0 0.0
    %375 = vmatprep.subr.mxu0 0.0
    %376 = vmatpush1.msra.mxu0 0.0
    %377 = vmatprep.subr.mxu0 0.0
    %378 = vmatpush1.msra.mxu0 0.0
    %379 = vmatprep.subr.mxu0 0.0
    %380 = vmatpush1.msra.mxu0 0.0
    %381 = vmatprep.subr.mxu0 0.0
    %382 = vmatpush1.msra.mxu0 0.0
    %383 = vmatprep.subr.mxu0 0.0
    %384 = vmatpush1.msra.mxu0 0.0
    %385 = vmatprep.subr.mxu0 0.0
    %386 = vmatpush1.msra.mxu0 0.0
    %387 = vmatprep.subr.mxu0 0.0
    %388 = vmatpush1.msra.mxu0 0.0
    %389 = vmatprep.subr.mxu0 0.0
    %390 = vmatpush1.msra.mxu0 0.0
    %391 = vmatprep.subr.mxu0 0.0
    %392 = vmatpush1.msra.mxu0 0.0
    %393 = vmatprep.subr.mxu0 0.0
    %394 = vmatpush1.msra.mxu0 0.0
    %395 = vmatprep.subr.mxu0 0.0
    %396 = vmatpush1.msra.mxu0 0.0
    %397 = vmatprep.subr.mxu0 0.0
    %398 = vmatpush1.msra.mxu0 0.0
    %399 = vmatprep.subr.mxu0 0.0
    %400 = vmatpush1.msra.mxu0 0.0
    %401 = vmatprep.subr.mxu0 0.0
    %402 = vmatpush1.msra.mxu0 0.0
    %403 = vmatprep.subr.mxu0 0.0
    %404 = vmatpush1.msra.mxu0 0.0
    %405 = vmatprep.subr.mxu0 0.0
    %406 = vmatpush1.msra.mxu0 0.0
    %407 = vmatprep.subr.mxu0 0.0
    %408 = vmatpush1.msra.mxu0 0.0
    %409 = vmatprep.subr.mxu0 0.0
    %410 = vmatpush1.msra.mxu0 0.0
    %411 = vmatprep.subr.mxu0 0.0
    %412 = vmatpush1.msra.mxu0 0.0
    %413 = vmatprep.subr.mxu0 0.0
    %414 = vmatpush1.msra.mxu0 0.0
    %415 = vmatprep.subr.mxu0 0.0
    %416 = vmatpush1.msra.mxu0 0.0
    %417 = vmatprep.subr.mxu0 0.0
    %418 = vmatpush1.msra.mxu0 0.0
    %419 = vmatprep.mubr.f32.mxu0 0.0
    %420 = vmatmul.mubr.f32.gmra.mrb[0].mxu0 %v350
    %v421 = vpop.f32.mrb[0].mxu0
    %v422 = vadd.f32 0.0, %v421
    %v423 = vpop.f32.mrb[0].mxu0
    %424 = vmatprep.mubr.f32.mxu0 0.0
    %425 = vmatmul.mubr.f32.gmra.mrb[0].mxu0 %v353
    %v426 = vpop.f32.mrb[0].mxu0
    %v427 = vadd.f32 0.0, %v426
    %v428 = vpop.f32.mrb[0].mxu0
    %429 = vdwg.mxu0
    %430 = vst.msk [vmem:[#allocation4] sm:$0xff] %vm263, %v422
    %431 = vst.msk [vmem:[#allocation4 + $0x8] sm:$0xff] %vm263, %v427
    %v432 = vld [vmem:[%s1] sm:$0xff]
    %v433 = vld [vmem:[%s1 + $0x8] sm:$0xff]
    %v435 = vsel %vm263, %v432, 0
    %v438 = vsel %vm263, %v433, 0
    %440 = vmatprep.subr.mxu0 0.0
    %441 = vmatpush1.msra.mxu0 %v249
    %442 = vmatprep.subr.mxu0 0.0
    %443 = vmatpush1.msra.mxu0 %v250
    %444 = vmatprep.subr.mxu0 0.0
    %445 = vmatpush1.msra.mxu0 %v251
    %446 = vmatprep.subr.mxu0 0.0
    %447 = vmatpush1.msra.mxu0 %v252
    %448 = vmatprep.subr.mxu0 0.0
    %449 = vmatpush1.msra.mxu0 0.0
    %450 = vmatprep.subr.mxu0 0.0
    %451 = vmatpush1.msra.mxu0 0.0
    %452 = vmatprep.subr.mxu0 0.0
    %453 = vmatpush1.msra.mxu0 0.0
    %454 = vmatprep.subr.mxu0 0.0
    %455 = vmatpush1.msra.mxu0 0.0
    %456 = vmatprep.subr.mxu0 0.0
    %457 = vmatpush1.msra.mxu0 0.0
    %458 = vmatprep.subr.mxu0 0.0
    %459 = vmatpush1.msra.mxu0 0.0
    %460 = vmatprep.subr.mxu0 0.0
    %461 = vmatpush1.msra.mxu0 0.0
    %462 = vmatprep.subr.mxu0 0.0
    %463 = vmatpush1.msra.mxu0 0.0
    %464 = vmatprep.subr.mxu0 0.0
    %465 = vmatpush1.msra.mxu0 0.0
    %466 = vmatprep.subr.mxu0 0.0
    %467 = vmatpush1.msra.mxu0 0.0
    %468 = vmatprep.subr.mxu0 0.0
    %469 = vmatpush1.msra.mxu0 0.0
    %470 = vmatprep.subr.mxu0 0.0
    %471 = vmatpush1.msra.mxu0 0.0
    %472 = vmatprep.subr.mxu0 0.0
    %473 = vmatpush1.msra.mxu0 0.0
    %474 = vmatprep.subr.mxu0 0.0
    %475 = vmatpush1.msra.mxu0 0.0
    %476 = vmatprep.subr.mxu0 0.0
    %477 = vmatpush1.msra.mxu0 0.0
    %478 = vmatprep.subr.mxu0 0.0
    %479 = vmatpush1.msra.mxu0 0.0
    %480 = vmatprep.subr.mxu0 0.0
    %481 = vmatpush1.msra.mxu0 0.0
    %482 = vmatprep.subr.mxu0 0.0
    %483 = vmatpush1.msra.mxu0 0.0
    %484 = vmatprep.subr.mxu0 0.0
    %485 = vmatpush1.msra.mxu0 0.0
    %486 = vmatprep.subr.mxu0 0.0
    %487 = vmatpush1.msra.mxu0 0.0
    %488 = vmatprep.subr.mxu0 0.0
    %489 = vmatpush1.msra.mxu0 0.0
    %490 = vmatprep.subr.mxu0 0.0
    %491 = vmatpush1.msra.mxu0 0.0
    %492 = vmatprep.subr.mxu0 0.0
    %493 = vmatpush1.msra.mxu0 0.0
    %494 = vmatprep.subr.mxu0 0.0
    %495 = vmatpush1.msra.mxu0 0.0
    %496 = vmatprep.subr.mxu0 0.0
    %497 = vmatpush1.msra.mxu0 0.0
    %498 = vmatprep.subr.mxu0 0.0
    %499 = vmatpush1.msra.mxu0 0.0
    %500 = vmatprep.subr.mxu0 0.0
    %501 = vmatpush1.msra.mxu0 0.0
    %502 = vmatprep.subr.mxu0 0.0
    %503 = vmatpush1.msra.mxu0 0.0
    %504 = vmatprep.mubr.f32.mxu0 0.0
    %505 = vmatmul.mubr.f32.gmra.mrb[0].mxu0 %v435
    %v506 = vpop.f32.mrb[0].mxu0
    %v507 = vadd.f32 0.0, %v506
    %v508 = vpop.f32.mrb[0].mxu0
    %509 = vmatprep.mubr.f32.mxu0 0.0
    %510 = vmatmul.mubr.f32.gmra.mrb[0].mxu0 %v438
    %v511 = vpop.f32.mrb[0].mxu0
    %v512 = vadd.f32 0.0, %v511
    %v513 = vpop.f32.mrb[0].mxu0
    %514 = vdwg.mxu0
    %515 = vst.msk [vmem:[#allocation5] sm:$0xff] %vm263, %v507
    %516 = vst.msk [vmem:[#allocation5 + $0x8] sm:$0xff] %vm263, %v512
    %v518 = vsel %vm263, %v203, 0
    %520 = vmatprep.subr.mxu0 0.0
    %521 = vmatpush1.msra.mxu0 %v204
    %522 = vmatprep.subr.mxu0 0.0
    %523 = vmatpush1.msra.mxu0 %v205
    %524 = vmatprep.subr.mxu0 0.0
    %525 = vmatpush1.msra.mxu0 %v206
    %526 = vmatprep.subr.mxu0 0.0
    %527 = vmatpush1.msra.mxu0 %v207
    %528 = vmatprep.subr.mxu0 0.0
    %529 = vmatpush1.msra.mxu0 0.0
    %530 = vmatprep.subr.mxu0 0.0
    %531 = vmatpush1.msra.mxu0 0.0
    %532 = vmatprep.subr.mxu0 0.0
    %533 = vmatpush1.msra.mxu0 0.0
    %534 = vmatprep.subr.mxu0 0.0
    %535 = vmatpush1.msra.mxu0 0.0
    %536 = vmatprep.subr.mxu0 0.0
    %537 = vmatpush1.msra.mxu0 0.0
    %538 = vmatprep.subr.mxu0 0.0
    %539 = vmatpush1.msra.mxu0 0.0
    %540 = vmatprep.subr.mxu0 0.0
    %541 = vmatpush1.msra.mxu0 0.0
    %542 = vmatprep.subr.mxu0 0.0
    %543 = vmatpush1.msra.mxu0 0.0
    %544 = vmatprep.subr.mxu0 0.0
    %545 = vmatpush1.msra.mxu0 0.0
    %546 = vmatprep.subr.mxu0 0.0
    %547 = vmatpush1.msra.mxu0 0.0
    %548 = vmatprep.subr.mxu0 0.0
    %549 = vmatpush1.msra.mxu0 0.0
    %550 = vmatprep.subr.mxu0 0.0
    %551 = vmatpush1.msra.mxu0 0.0
    %552 = vmatprep.subr.mxu0 0.0
    %553 = vmatpush1.msra.mxu0 0.0
    %554 = vmatprep.subr.mxu0 0.0
    %555 = vmatpush1.msra.mxu0 0.0
    %556 = vmatprep.subr.mxu0 0.0
    %557 = vmatpush1.msra.mxu0 0.0
    %558 = vmatprep.subr.mxu0 0.0
    %559 = vmatpush1.msra.mxu0 0.0
    %560 = vmatprep.subr.mxu0 0.0
    %561 = vmatpush1.msra.mxu0 0.0
    %562 = vmatprep.subr.mxu0 0.0
    %563 = vmatpush1.msra.mxu0 0.0
    %564 = vmatprep.subr.mxu0 0.0
    %565 = vmatpush1.msra.mxu0 0.0
    %566 = vmatprep.subr.mxu0 0.0
    %567 = vmatpush1.msra.mxu0 0.0
    %568 = vmatprep.subr.mxu0 0.0
    %569 = vmatpush1.msra.mxu0 0.0
    %570 = vmatprep.subr.mxu0 0.0
    %571 = vmatpush1.msra.mxu0 0.0
    %572 = vmatprep.subr.mxu0 0.0
    %573 = vmatpush1.msra.mxu0 0.0
    %574 = vmatprep.subr.mxu0 0.0
    %575 = vmatpush1.msra.mxu0 0.0
    %576 = vmatprep.subr.mxu0 0.0
    %577 = vmatpush1.msra.mxu0 0.0
    %578 = vmatprep.subr.mxu0 0.0
    %579 = vmatpush1.msra.mxu0 0.0
    %580 = vmatprep.subr.mxu0 0.0
    %581 = vmatpush1.msra.mxu0 0.0
    %582 = vmatprep.subr.mxu0 0.0
    %583 = vmatpush1.msra.mxu0 0.0
    %584 = vmatprep.mubr.f32.mxu0 0.0
    %585 = vmatmul.mubr.f32.gmra.mrb[0].mxu0 %v518
    %v586 = vpop.f32.mrb[0].mxu0
    %v587 = vadd.f32 0.0, %v586
    %v588 = vpop.f32.mrb[0].mxu0
    %589 = vdwg.mxu0
    %590 = vmatprep.subr.mxu0 0.0
    %591 = vmatpush1.msra.mxu0 %v214
    %592 = vmatprep.subr.mxu0 0.0
    %593 = vmatpush1.msra.mxu0 %v215
    %594 = vmatprep.subr.mxu0 0.0
    %595 = vmatpush1.msra.mxu0 %v216
    %596 = vmatprep.subr.mxu0 0.0
    %597 = vmatpush1.msra.mxu0 %v217
    %598 = vmatprep.subr.mxu0 0.0
    %599 = vmatpush1.msra.mxu0 0.0
    %600 = vmatprep.subr.mxu0 0.0
    %601 = vmatpush1.msra.mxu0 0.0
    %602 = vmatprep.subr.mxu0 0.0
    %603 = vmatpush1.msra.mxu0 0.0
    %604 = vmatprep.subr.mxu0 0.0
    %605 = vmatpush1.msra.mxu0 0.0
    %606 = vmatprep.subr.mxu0 0.0
    %607 = vmatpush1.msra.mxu0 0.0
    %608 = vmatprep.subr.mxu0 0.0
    %609 = vmatpush1.msra.mxu0 0.0
    %610 = vmatprep.subr.mxu0 0.0
    %611 = vmatpush1.msra.mxu0 0.0
    %612 = vmatprep.subr.mxu0 0.0
    %613 = vmatpush1.msra.mxu0 0.0
    %614 = vmatprep.subr.mxu0 0.0
    %615 = vmatpush1.msra.mxu0 0.0
    %616 = vmatprep.subr.mxu0 0.0
    %617 = vmatpush1.msra.mxu0 0.0
    %618 = vmatprep.subr.mxu0 0.0
    %619 = vmatpush1.msra.mxu0 0.0
    %620 = vmatprep.subr.mxu0 0.0
    %621 = vmatpush1.msra.mxu0 0.0
    %622 = vmatprep.subr.mxu0 0.0
    %623 = vmatpush1.msra.mxu0 0.0
    %624 = vmatprep.subr.mxu0 0.0
    %625 = vmatpush1.msra.mxu0 0.0
    %626 = vmatprep.subr.mxu0 0.0
    %627 = vmatpush1.msra.mxu0 0.0
    %628 = vmatprep.subr.mxu0 0.0
    %629 = vmatpush1.msra.mxu0 0.0
    %630 = vmatprep.subr.mxu0 0.0
    %631 = vmatpush1.msra.mxu0 0.0
    %632 = vmatprep.subr.mxu0 0.0
    %633 = vmatpush1.msra.mxu0 0.0
    %634 = vmatprep.subr.mxu0 0.0
    %635 = vmatpush1.msra.mxu0 0.0
    %636 = vmatprep.subr.mxu0 0.0
    %637 = vmatpush1.msra.mxu0 0.0
    %638 = vmatprep.subr.mxu0 0.0
    %639 = vmatpush1.msra.mxu0 0.0
    %640 = vmatprep.subr.mxu0 0.0
    %641 = vmatpush1.msra.mxu0 0.0
    %642 = vmatprep.subr.mxu0 0.0
    %643 = vmatpush1.msra.mxu0 0.0
    %644 = vmatprep.subr.mxu0 0.0
    %645 = vmatpush1.msra.mxu0 0.0
    %646 = vmatprep.subr.mxu0 0.0
    %647 = vmatpush1.msra.mxu0 0.0
    %648 = vmatprep.subr.mxu0 0.0
    %649 = vmatpush1.msra.mxu0 0.0
    %650 = vmatprep.subr.mxu0 0.0
    %651 = vmatpush1.msra.mxu0 0.0
    %652 = vmatprep.subr.mxu0 0.0
    %653 = vmatpush1.msra.mxu0 0.0
    %654 = vmatprep.mubr.f32.mxu0 0.0
    %655 = vmatmul.mubr.f32.gmra.mrb[0].mxu0 %v518
    %v656 = vpop.f32.mrb[0].mxu0
    %v657 = vadd.f32 0.0, %v656
    %v658 = vpop.f32.mrb[0].mxu0
    %659 = vdwg.mxu0
    %v660 = vld [vmem:[#allocation3] ss:$2 sm:$0xff]
    %v661 = vlaneseq
    %v662 = vshrl.u32 %v661, 7
    %v663 = vsub.s32 0, %v662
    %v664 = vrot.slane %v587, %v663
    %v665 = vadd.f32 %v660, %v664
    %v667 = vlaneseq
    %v668 = vshrl.u32 %v667, 7
    %v669 = vsub.s32 0, %v668
    %v670 = vrot.slane %v212, %v669
    %v672 = vadd.f32 %v665, %v670
    %v673 = vtanh.pop %v672
    %v675 = vlaneseq
    %v676 = vshrl.u32 %v675, 7
    %v677 = vsub.s32 0, %v676
    %v678 = vrot.slane %v213, %v677
    %v680 = vmul.f32 %v673, %v678
    %v681 = vsel %vm263, %v680, 0.0
    %682 = vadd.xlane.f32.xlu0 %v681
    %v683 = vpop.xlane.xlu0 %682
    %v684 = vrot.slane %v683, 4
    %v685 = vmax.f32 %v683, %v684
    %v686 = vrot.slane %v685, 2
    %v687 = vmax.f32 %v685, %v686
    %v688 = vrot.slane %v687, 1
    %v689 = vmax.f32 %v687, %v688
    %v690 = vsub.f32 %v683, %v689
    %v691 = vmul.f32 %v690, 1.442695
    %v692 = vpow.pop %v691
    %v693 = vrot.slane %v692, 4
    %v694 = vadd.f32 %v692, %v693
    %v695 = vrot.slane %v694, 2
    %v696 = vadd.f32 %v694, %v695
    %v697 = vrot.slane %v696, 1
    %v698 = vadd.f32 %v696, %v697
    %v699 = vrcp.pop %v698
    %v700 = vmul.f32 %v692, %v699
    %v701 = vld [vmem:[%s1] ss:$2 sm:$0xff]
    %v702 = vmul.f32 %v700, %v701
    %v703 = vsel %vm263, %v702, 0.0
    %v704 = vrot.slane %v703, 4
    %v705 = vadd.f32 %v703, %v704
    %v706 = vrot.slane %v705, 2
    %v707 = vadd.f32 %v705, %v706
    %v708 = vrot.slane %v707, 1
    %v709 = vadd.f32 %v707, %v708
    %v710 = vld [vmem:[#allocation4] ss:$2 sm:$0xff]
    %v711 = vlaneseq
    %v712 = vshrl.u32 %v711, 7
    %v713 = vsub.s32 0, %v712
    %v714 = vrot.slane %v657, %v713
    %v715 = vadd.f32 %v710, %v714
    %v717 = vlaneseq
    %v718 = vshrl.u32 %v717, 7
    %v719 = vsub.s32 0, %v718
    %v720 = vrot.slane %v222, %v719
    %v722 = vadd.f32 %v715, %v720
    %v723 = vtanh.pop %v722
    %v725 = vlaneseq
    %v726 = vshrl.u32 %v725, 7
    %v727 = vsub.s32 0, %v726
    %v728 = vrot.slane %v223, %v727
    %v730 = vmul.f32 %v723, %v728
    %v731 = vsel %vm263, %v730, 0.0
    %732 = vadd.xlane.f32.xlu0 %v731
    %v733 = vpop.xlane.xlu0 %732
    %v734 = vrot.slane %v733, 4
    %v735 = vmax.f32 %v733, %v734
    %v736 = vrot.slane %v735, 2
    %v737 = vmax.f32 %v735, %v736
    %v738 = vrot.slane %v737, 1
    %v739 = vmax.f32 %v737, %v738
    %v740 = vsub.f32 %v733, %v739
    %v741 = vmul.f32 %v740, 1.442695
    %v742 = vpow.pop %v741
    %v743 = vrot.slane %v742, 4
    %v744 = vadd.f32 %v742, %v743
    %v745 = vrot.slane %v744, 2
    %v746 = vadd.f32 %v744, %v745
    %v747 = vrot.slane %v746, 1
    %v748 = vadd.f32 %v746, %v747
    %v749 = vrcp.pop %v748
    %v750 = vmul.f32 %v742, %v749
    %v751 = vld [vmem:[%s2] ss:$2 sm:$0xff]
    %v752 = vmul.f32 %v750, %v751
    %v753 = vsel %vm263, %v752, 0.0
    %v754 = vrot.slane %v753, 4
    %v755 = vadd.f32 %v753, %v754
    %v756 = vrot.slane %v755, 2
    %v757 = vadd.f32 %v755, %v756
    %v758 = vrot.slane %v757, 1
    %v759 = vadd.f32 %v757, %v758
    %s760 = scalar_lea.vmem [#allocation3], 1
    %v761 = vld [vmem:[%s760] ss:$2 sm:$0xff]
    %v762 = vlaneseq
    %v763 = vshrl.u32 %v762, 7
    %v764 = vsub.s32 1, %v763
    %v765 = vrot.slane %v587, %v764
    %v766 = vadd.f32 %v761, %v765
    %v767 = vadd.f32 %v766, %v670
    %v768 = vtanh.pop %v767
    %v769 = vmul.f32 %v768, %v678
    %v770 = vsel %vm263, %v769, 0.0
    %771 = vadd.xlane.f32.xlu0 %v770
    %v772 = vpop.xlane.xlu0 %771
    %v773 = vrot.slane %v772, 4
    %v774 = vmax.f32 %v772, %v773
    %v775 = vrot.slane %v774, 2
    %v776 = vmax.f32 %v774, %v775
    %v777 = vrot.slane %v776, 1
    %v778 = vmax.f32 %v776, %v777
    %v779 = vsub.f32 %v772, %v778
    %v780 = vmul.f32 %v779, 1.442695
    %v781 = vpow.pop %v780
    %v782 = vrot.slane %v781, 4
    %v783 = vadd.f32 %v781, %v782
    %v784 = vrot.slane %v783, 2
    %v785 = vadd.f32 %v783, %v784
    %v786 = vrot.slane %v785, 1
    %v787 = vadd.f32 %v785, %v786
    %v788 = vrcp.pop %v787
    %v789 = vmul.f32 %v781, %v788
    %s790 = scalar_lea.vmem %s1, 1
    %v791 = vld [vmem:[%s790] ss:$2 sm:$0xff]
    %v792 = vmul.f32 %v789, %v791
    %v793 = vsel %vm263, %v792, 0.0
    %v794 = vrot.slane %v793, 4
    %v795 = vadd.f32 %v793, %v794
    %v796 = vrot.slane %v795, 2
    %v797 = vadd.f32 %v795, %v796
    %v798 = vrot.slane %v797, 1
    %v799 = vadd.f32 %v797, %v798
    %s800 = scalar_lea.vmem [#allocation4], 1
    %v801 = vld [vmem:[%s800] ss:$2 sm:$0xff]
    %v802 = vlaneseq
    %v803 = vshrl.u32 %v802, 7
    %v804 = vsub.s32 1, %v803
    %v805 = vrot.slane %v657, %v804
    %v806 = vadd.f32 %v801, %v805
    %v807 = vadd.f32 %v806, %v720
    %v808 = vtanh.pop %v807
    %v809 = vmul.f32 %v808, %v728
    %v810 = vsel %vm263, %v809, 0.0
    %811 = vadd.xlane.f32.xlu0 %v810
    %v812 = vpop.xlane.xlu0 %811
    %v813 = vrot.slane %v812, 4
    %v814 = vmax.f32 %v812, %v813
    %v815 = vrot.slane %v814, 2
    %v816 = vmax.f32 %v814, %v815
    %v817 = vrot.slane %v816, 1
    %v818 = vmax.f32 %v816, %v817
    %v819 = vsub.f32 %v812, %v818
    %v820 = vmul.f32 %v819, 1.442695
    %v821 = vpow.pop %v820
    %v822 = vrot.slane %v821, 4
    %v823 = vadd.f32 %v821, %v822
    %v824 = vrot.slane %v823, 2
    %v825 = vadd.f32 %v823, %v824
    %v826 = vrot.slane %v825, 1
    %v827 = vadd.f32 %v825, %v826
    %v828 = vrcp.pop %v827
    %v829 = vmul.f32 %v821, %v828
    %s830 = scalar_lea.vmem %s2, 1
    %v831 = vld [vmem:[%s830] ss:$2 sm:$0xff]
    %v832 = vmul.f32 %v829, %v831
    %v833 = vsel %vm263, %v832, 0.0
    %v834 = vrot.slane %v833, 4
    %v835 = vadd.f32 %v833, %v834
    %v836 = vrot.slane %v835, 2
    %v837 = vadd.f32 %v835, %v836
    %v838 = vrot.slane %v837, 1
    %v839 = vadd.f32 %v837, %v838
    %vm840 = vcmask 1040384
    %v841 = vsel %vm840, %v709, %v799
    %v842 = vsel %vm840, %v759, %v839
    %s843 = smul.u32 1, 1
    %s844 = sshll.u32 %s843, 4
    %845 = dma.done [#allocation6], %s844
    %s846 = sshll.u32 %s843, 4
    %847 = dma.done %s158, %s846
    %v848 = vld [vmem:[#allocation2] sm:$0x3]
    %v850 = vsel %vm263, %v842, 0
    %852 = vmatprep.subr.mxu0 0.0
    %853 = vmatpush1.msra.mxu0 %v228
    %854 = vmatprep.subr.mxu0 0.0
    %855 = vmatpush1.msra.mxu0 %v229
    %856 = vmatprep.subr.mxu0 0.0
    %857 = vmatpush1.msra.mxu0 %v230
    %858 = vmatprep.subr.mxu0 0.0
    %859 = vmatpush1.msra.mxu0 %v231
    %860 = vmatprep.subr.mxu0 0.0
    %861 = vmatpush1.msra.mxu0 0.0
    %862 = vmatprep.subr.mxu0 0.0
    %863 = vmatpush1.msra.mxu0 0.0
    %864 = vmatprep.subr.mxu0 0.0
    %865 = vmatpush1.msra.mxu0 0.0
    %866 = vmatprep.subr.mxu0 0.0
    %867 = vmatpush1.msra.mxu0 0.0
    %868 = vmatprep.subr.mxu0 0.0
    %869 = vmatpush1.msra.mxu0 0.0
    %870 = vmatprep.subr.mxu0 0.0
    %871 = vmatpush1.msra.mxu0 0.0
    %872 = vmatprep.subr.mxu0 0.0
    %873 = vmatpush1.msra.mxu0 0.0
    %874 = vmatprep.subr.mxu0 0.0
    %875 = vmatpush1.msra.mxu0 0.0
    %876 = vmatprep.subr.mxu0 0.0
    %877 = vmatpush1.msra.mxu0 0.0
    %878 = vmatprep.subr.mxu0 0.0
    %879 = vmatpush1.msra.mxu0 0.0
    %880 = vmatprep.subr.mxu0 0.0
    %881 = vmatpush1.msra.mxu0 0.0
    %882 = vmatprep.subr.mxu0 0.0
    %883 = vmatpush1.msra.mxu0 0.0
    %884 = vmatprep.subr.mxu0 0.0
    %885 = vmatpush1.msra.mxu0 0.0
    %886 = vmatprep.subr.mxu0 0.0
    %887 = vmatpush1.msra.mxu0 0.0
    %888 = vmatprep.subr.mxu0 0.0
    %889 = vmatpush1.msra.mxu0 0.0
    %890 = vmatprep.subr.mxu0 0.0
    %891 = vmatpush1.msra.mxu0 0.0
    %892 = vmatprep.subr.mxu0 0.0
    %893 = vmatpush1.msra.mxu0 0.0
    %894 = vmatprep.subr.mxu0 0.0
    %895 = vmatpush1.msra.mxu0 0.0
    %896 = vmatprep.subr.mxu0 0.0
    %897 = vmatpush1.msra.mxu0 0.0
    %898 = vmatprep.subr.mxu0 0.0
    %899 = vmatpush1.msra.mxu0 0.0
    %900 = vmatprep.subr.mxu0 0.0
    %901 = vmatpush1.msra.mxu0 0.0
    %902 = vmatprep.subr.mxu0 0.0
    %903 = vmatpush1.msra.mxu0 0.0
    %904 = vmatprep.subr.mxu0 0.0
    %905 = vmatpush1.msra.mxu0 0.0
    %906 = vmatprep.subr.mxu0 0.0
    %907 = vmatpush1.msra.mxu0 0.0
    %908 = vmatprep.subr.mxu0 0.0
    %909 = vmatpush1.msra.mxu0 0.0
    %910 = vmatprep.subr.mxu0 0.0
    %911 = vmatpush1.msra.mxu0 0.0
    %912 = vmatprep.subr.mxu0 0.0
    %913 = vmatpush1.msra.mxu0 0.0
    %914 = vmatprep.subr.mxu0 0.0
    %915 = vmatpush1.msra.mxu0 0.0
    %916 = vmatprep.mubr.f32.mxu0 0.0
    %917 = vmatmul.mubr.f32.gmra.mrb[0].mxu0 %v850
    %v918 = vpop.f32.mrb[0].mxu0
    %v919 = vadd.f32 0.0, %v918
    %v920 = vpop.f32.mrb[0].mxu0
    %921 = vdwg.mxu0
    %v923 = vsel %vm263, %v841, 0
    %925 = vmatprep.subr.mxu0 0.0
    %926 = vmatpush1.msra.mxu0 %v224
    %927 = vmatprep.subr.mxu0 0.0
    %928 = vmatpush1.msra.mxu0 %v225
    %929 = vmatprep.subr.mxu0 0.0
    %930 = vmatpush1.msra.mxu0 %v226
    %931 = vmatprep.subr.mxu0 0.0
    %932 = vmatpush1.msra.mxu0 %v227
    %933 = vmatprep.subr.mxu0 0.0
    %934 = vmatpush1.msra.mxu0 0.0
    %935 = vmatprep.subr.mxu0 0.0
    %936 = vmatpush1.msra.mxu0 0.0
    %937 = vmatprep.subr.mxu0 0.0
    %938 = vmatpush1.msra.mxu0 0.0
    %939 = vmatprep.subr.mxu0 0.0
    %940 = vmatpush1.msra.mxu0 0.0
    %941 = vmatprep.subr.mxu0 0.0
    %942 = vmatpush1.msra.mxu0 0.0
    %943 = vmatprep.subr.mxu0 0.0
    %944 = vmatpush1.msra.mxu0 0.0
    %945 = vmatprep.subr.mxu0 0.0
    %946 = vmatpush1.msra.mxu0 0.0
    %947 = vmatprep.subr.mxu0 0.0
    %948 = vmatpush1.msra.mxu0 0.0
    %949 = vmatprep.subr.mxu0 0.0
    %950 = vmatpush1.msra.mxu0 0.0
    %951 = vmatprep.subr.mxu0 0.0
    %952 = vmatpush1.msra.mxu0 0.0
    %953 = vmatprep.subr.mxu0 0.0
    %954 = vmatpush1.msra.mxu0 0.0
    %955 = vmatprep.subr.mxu0 0.0
    %956 = vmatpush1.msra.mxu0 0.0
    %957 = vmatprep.subr.mxu0 0.0
    %958 = vmatpush1.msra.mxu0 0.0
    %959 = vmatprep.subr.mxu0 0.0
    %960 = vmatpush1.msra.mxu0 0.0
    %961 = vmatprep.subr.mxu0 0.0
    %962 = vmatpush1.msra.mxu0 0.0
    %963 = vmatprep.subr.mxu0 0.0
    %964 = vmatpush1.msra.mxu0 0.0
    %965 = vmatprep.subr.mxu0 0.0
    %966 = vmatpush1.msra.mxu0 0.0
    %967 = vmatprep.subr.mxu0 0.0
    %968 = vmatpush1.msra.mxu0 0.0
    %969 = vmatprep.subr.mxu0 0.0
    %970 = vmatpush1.msra.mxu0 0.0
    %971 = vmatprep.subr.mxu0 0.0
    %972 = vmatpush1.msra.mxu0 0.0
    %973 = vmatprep.subr.mxu0 0.0
    %974 = vmatpush1.msra.mxu0 0.0
    %975 = vmatprep.subr.mxu0 0.0
    %976 = vmatpush1.msra.mxu0 0.0
    %977 = vmatprep.subr.mxu0 0.0
    %978 = vmatpush1.msra.mxu0 0.0
    %979 = vmatprep.subr.mxu0 0.0
    %980 = vmatpush1.msra.mxu0 0.0
    %981 = vmatprep.subr.mxu0 0.0
    %982 = vmatpush1.msra.mxu0 0.0
    %983 = vmatprep.subr.mxu0 0.0
    %984 = vmatpush1.msra.mxu0 0.0
    %985 = vmatprep.subr.mxu0 0.0
    %986 = vmatpush1.msra.mxu0 0.0
    %987 = vmatprep.subr.mxu0 0.0
    %988 = vmatpush1.msra.mxu0 0.0
    %989 = vmatprep.mubr.f32.mxu0 0.0
    %990 = vmatmul.mubr.f32.gmra.mrb[0].mxu0 %v923
    %v991 = vpop.f32.mrb[0].mxu0
    %v992 = vadd.f32 %v919, %v991
    %v993 = vpop.f32.mrb[0].mxu0
    %994 = vdwg.mxu0
    %v996 = vsel %vm263, %v848, 0
    %998 = vmatprep.subr.mxu0 0.0
    %999 = vmatpush1.msra.mxu0 %v232
    %1000 = vmatprep.subr.mxu0 0.0
    %1001 = vmatpush1.msra.mxu0 %v233
    %1002 = vmatprep.subr.mxu0 0.0
    %1003 = vmatpush1.msra.mxu0 %v234
    %1004 = vmatprep.subr.mxu0 0.0
    %1005 = vmatpush1.msra.mxu0 %v235
    %1006 = vmatprep.subr.mxu0 0.0
    %1007 = vmatpush1.msra.mxu0 0.0
    %1008 = vmatprep.subr.mxu0 0.0
    %1009 = vmatpush1.msra.mxu0 0.0
    %1010 = vmatprep.subr.mxu0 0.0
    %1011 = vmatpush1.msra.mxu0 0.0
    %1012 = vmatprep.subr.mxu0 0.0
    %1013 = vmatpush1.msra.mxu0 0.0
    %1014 = vmatprep.subr.mxu0 0.0
    %1015 = vmatpush1.msra.mxu0 0.0
    %1016 = vmatprep.subr.mxu0 0.0
    %1017 = vmatpush1.msra.mxu0 0.0
    %1018 = vmatprep.subr.mxu0 0.0
    %1019 = vmatpush1.msra.mxu0 0.0
    %1020 = vmatprep.subr.mxu0 0.0
    %1021 = vmatpush1.msra.mxu0 0.0
    %1022 = vmatprep.subr.mxu0 0.0
    %1023 = vmatpush1.msra.mxu0 0.0
    %1024 = vmatprep.subr.mxu0 0.0
    %1025 = vmatpush1.msra.mxu0 0.0
    %1026 = vmatprep.subr.mxu0 0.0
    %1027 = vmatpush1.msra.mxu0 0.0
    %1028 = vmatprep.subr.mxu0 0.0
    %1029 = vmatpush1.msra.mxu0 0.0
    %1030 = vmatprep.subr.mxu0 0.0
    %1031 = vmatpush1.msra.mxu0 0.0
    %1032 = vmatprep.subr.mxu0 0.0
    %1033 = vmatpush1.msra.mxu0 0.0
    %1034 = vmatprep.subr.mxu0 0.0
    %1035 = vmatpush1.msra.mxu0 0.0
    %1036 = vmatprep.subr.mxu0 0.0
    %1037 = vmatpush1.msra.mxu0 0.0
    %1038 = vmatprep.subr.mxu0 0.0
    %1039 = vmatpush1.msra.mxu0 0.0
    %1040 = vmatprep.subr.mxu0 0.0
    %1041 = vmatpush1.msra.mxu0 0.0
    %1042 = vmatprep.subr.mxu0 0.0
    %1043 = vmatpush1.msra.mxu0 0.0
    %1044 = vmatprep.subr.mxu0 0.0
    %1045 = vmatpush1.msra.mxu0 0.0
    %1046 = vmatprep.subr.mxu0 0.0
    %1047 = vmatpush1.msra.mxu0 0.0
    %1048 = vmatprep.subr.mxu0 0.0
    %1049 = vmatpush1.msra.mxu0 0.0
    %1050 = vmatprep.subr.mxu0 0.0
    %1051 = vmatpush1.msra.mxu0 0.0
    %1052 = vmatprep.subr.mxu0 0.0
    %1053 = vmatpush1.msra.mxu0 0.0
    %1054 = vmatprep.subr.mxu0 0.0
    %1055 = vmatpush1.msra.mxu0 0.0
    %1056 = vmatprep.subr.mxu0 0.0
    %1057 = vmatpush1.msra.mxu0 0.0
    %1058 = vmatprep.subr.mxu0 0.0
    %1059 = vmatpush1.msra.mxu0 0.0
    %1060 = vmatprep.subr.mxu0 0.0
    %1061 = vmatpush1.msra.mxu0 0.0
    %1062 = vmatprep.mubr.f32.mxu0 0.0
    %1063 = vmatmul.mubr.f32.gmra.mrb[0].mxu0 %v996
    %v1064 = vpop.f32.mrb[0].mxu0
    %v1065 = vadd.f32 0.0, %v1064
    %v1066 = vpop.f32.mrb[0].mxu0
    %1067 = vdwg.mxu0
    %v1068 = vadd.f32 %v992, %v1065
    %v1070 = vlaneseq
    %v1071 = vshrl.u32 %v1070, 7
    %v1072 = vsub.s32 0, %v1071
    %v1073 = vrot.slane %v240, %v1072
    %v1075 = vadd.f32 %v1068, %v1073
    %v1077 = vlaneseq
    %v1078 = vshrl.u32 %v1077, 7
    %v1079 = vsub.s32 0, %v1078
    %v1080 = vrot.slane %v241, %v1079
    %1082 = vmatprep.subr.mxu0 0.0
    %1083 = vmatpush1.msra.mxu0 %v236
    %1084 = vmatprep.subr.mxu0 0.0
    %1085 = vmatpush1.msra.mxu0 %v237
    %1086 = vmatprep.subr.mxu0 0.0
    %1087 = vmatpush1.msra.mxu0 %v238
    %1088 = vmatprep.subr.mxu0 0.0
    %1089 = vmatpush1.msra.mxu0 %v239
    %1090 = vmatprep.subr.mxu0 0.0
    %1091 = vmatpush1.msra.mxu0 0.0
    %1092 = vmatprep.subr.mxu0 0.0
    %1093 = vmatpush1.msra.mxu0 0.0
    %1094 = vmatprep.subr.mxu0 0.0
    %1095 = vmatpush1.msra.mxu0 0.0
    %1096 = vmatprep.subr.mxu0 0.0
    %1097 = vmatpush1.msra.mxu0 0.0
    %1098 = vmatprep.subr.mxu0 0.0
    %1099 = vmatpush1.msra.mxu0 0.0
    %1100 = vmatprep.subr.mxu0 0.0
    %1101 = vmatpush1.msra.mxu0 0.0
    %1102 = vmatprep.subr.mxu0 0.0
    %1103 = vmatpush1.msra.mxu0 0.0
    %1104 = vmatprep.subr.mxu0 0.0
    %1105 = vmatpush1.msra.mxu0 0.0
    %1106 = vmatprep.subr.mxu0 0.0
    %1107 = vmatpush1.msra.mxu0 0.0
    %1108 = vmatprep.subr.mxu0 0.0
    %1109 = vmatpush1.msra.mxu0 0.0
    %1110 = vmatprep.subr.mxu0 0.0
    %1111 = vmatpush1.msra.mxu0 0.0
    %1112 = vmatprep.subr.mxu0 0.0
    %1113 = vmatpush1.msra.mxu0 0.0
    %1114 = vmatprep.subr.mxu0 0.0
    %1115 = vmatpush1.msra.mxu0 0.0
    %1116 = vmatprep.subr.mxu0 0.0
    %1117 = vmatpush1.msra.mxu0 0.0
    %1118 = vmatprep.subr.mxu0 0.0
    %1119 = vmatpush1.msra.mxu0 0.0
    %1120 = vmatprep.subr.mxu0 0.0
    %1121 = vmatpush1.msra.mxu0 0.0
    %1122 = vmatprep.subr.mxu0 0.0
    %1123 = vmatpush1.msra.mxu0 0.0
    %1124 = vmatprep.subr.mxu0 0.0
    %1125 = vmatpush1.msra.mxu0 0.0
    %1126 = vmatprep.subr.mxu0 0.0
    %1127 = vmatpush1.msra.mxu0 0.0
    %1128 = vmatprep.subr.mxu0 0.0
    %1129 = vmatpush1.msra.mxu0 0.0
    %1130 = vmatprep.subr.mxu0 0.0
    %1131 = vmatpush1.msra.mxu0 0.0
    %1132 = vmatprep.subr.mxu0 0.0
    %1133 = vmatpush1.msra.mxu0 0.0
    %1134 = vmatprep.subr.mxu0 0.0
    %1135 = vmatpush1.msra.mxu0 0.0
    %1136 = vmatprep.subr.mxu0 0.0
    %1137 = vmatpush1.msra.mxu0 0.0
    %1138 = vmatprep.subr.mxu0 0.0
    %1139 = vmatpush1.msra.mxu0 0.0
    %1140 = vmatprep.subr.mxu0 0.0
    %1141 = vmatpush1.msra.mxu0 0.0
    %1142 = vmatprep.subr.mxu0 0.0
    %1143 = vmatpush1.msra.mxu0 0.0
    %1144 = vmatprep.subr.mxu0 0.0
    %1145 = vmatpush1.msra.mxu0 0.0
    %1146 = vmatprep.mubr.f32.mxu0 0.0
    %1147 = vmatmul.mubr.f32.gmra.mrb[0].mxu0 %v518
    %v1148 = vpop.f32.mrb[0].mxu0
    %v1149 = vadd.f32 %v1080, %v1148
    %v1150 = vpop.f32.mrb[0].mxu0
    %1151 = vdwg.mxu0
    %v1152 = vadd.f32 %v1075, %v1149
    %v1153 = vxor.u32 %v1152, 2147483648
    %v1154 = vmul.f32 %v1153, 1.442695
    %v1155 = vpow.pop %v1154
    %v1156 = vadd.f32 %v1155, 1.0
    %v1157 = vrcp.pop %v1156
    %v1158 = vmul.f32 1.0, %v1157
    %1160 = vrot.lane.b32.xlu0 %v1149, 64
    %v1161 = vpop.permute.xlu0 %1160
    %v1163 = vmul.f32 %v1158, %v1161
    %1165 = vrot.lane.b32.xlu0 %v1163, 64
    %v1166 = vpop.permute.xlu0 %1165
    %v1168 = vadd.f32 %v1075, %v1166
    %v1169 = vtanh.pop %v1168
    %v1170 = vsub.f32 1.0, %v1158
    %1172 = vrot.lane.b32.xlu0 %v1169, 96
    %v1173 = vpop.permute.xlu0 %1172
    %v1175 = vmul.f32 %v1170, %v1173
    %1176 = vrot.lane.b32.xlu0 %v203, 32
    %v1177 = vpop.permute.xlu0 %1176
    %v1179 = vmul.f32 %v1158, %v1177
    %v1180 = vadd.f32 %v1175, %v1179
    %1182 = vrot.lane.b32.xlu0 %v1180, 96
    %v1183 = vpop.permute.xlu0 %1182
    %vm1185 = vcmask 254976
    %1186 = vst.msk [vmem:[#allocation14] sm:$0x3] %vm1185, %v1183
    %v1187 = vsel %vm1185, %v1183, 0.0
    %1188 = vadd.xlane.f32.xlu0 %v1187
    %v1189 = vpop.xlane.xlu0 %1188
    %v1190 = vrcp.pop 32.0
    %v1191 = vmul.f32 %v1189, %v1190
    %v1192 = vsub.f32 %v1180, %v1191
    %v1193 = vmul.f32 %v1192, %v1192
    %1195 = vrot.lane.b32.xlu0 %v1193, 96
    %v1196 = vpop.permute.xlu0 %1195
    %v1198 = vsel %vm1185, %v1196, 0.0
    %1199 = vadd.xlane.f32.xlu0 %v1198
    %v1200 = vpop.xlane.xlu0 %1199
    %v1201 = vrcp.pop 31.0
    %v1202 = vmul.f32 %v1200, %v1201
    %v1203 = vrsqrt.pop %v1202
    %v1204 = vmul.f32 %v1202, %v1203
    %vm1205 = vcmp.eq.f32.partialorder %v1202, inf
    %v1206 = vsel %vm1205, %v1202, %v1204
    %vm1207 = vcmp.eq.f32.partialorder %v1202, 0.0
    %v1208 = vand.u32 %v1202, 2147483648
    %v1209 = vsel %vm1207, %v1208, %v1206
    %v1210 = vadd.f32 %v1209, 0.001
    %v1211 = vrcp.pop %v1210
    %v1212 = vmul.f32 %v1192, %v1211
    %v1214 = vlaneseq
    %v1215 = vshrl.u32 %v1214, 7
    %v1216 = vsub.s32 0, %v1215
    %v1217 = vrot.slane %v242, %v1216
    %1218 = vrot.lane.b32.xlu0 %v1217, 32
    %v1219 = vpop.permute.xlu0 %1218
    %v1221 = vmul.f32 %v1212, %v1219
    %v1223 = vlaneseq
    %v1224 = vshrl.u32 %v1223, 7
    %v1225 = vsub.s32 0, %v1224
    %v1226 = vrot.slane %v243, %v1225
    %1227 = vrot.lane.b32.xlu0 %v1226, 32
    %v1228 = vpop.permute.xlu0 %1227
    %v1230 = vadd.f32 %v1221, %v1228
    %v1232 = vlaneseq
    %v1233 = vshrl.u32 %v1232, 7
    %v1234 = vsub.s32 0, %v1233
    %v1235 = vrot.slane %v248, %v1234
    %1238 = vrot.lane.b32.xlu0 %v1230, 96
    %v1239 = vpop.permute.xlu0 %1238
    %v1240 = vsel %vm263, %v1239, 0
    %1242 = vmatprep.subr.mxu0 0.0
    %1243 = vmatpush1.msra.mxu0 %v244
    %1244 = vmatprep.subr.mxu0 0.0
    %1245 = vmatpush1.msra.mxu0 %v245
    %1246 = vmatprep.subr.mxu0 0.0
    %1247 = vmatpush1.msra.mxu0 %v246
    %1248 = vmatprep.subr.mxu0 0.0
    %1249 = vmatpush1.msra.mxu0 %v247
    %1250 = vmatprep.subr.mxu0 0.0
    %1251 = vmatpush1.msra.mxu0 0.0
    %1252 = vmatprep.subr.mxu0 0.0
    %1253 = vmatpush1.msra.mxu0 0.0
    %1254 = vmatprep.subr.mxu0 0.0
    %1255 = vmatpush1.msra.mxu0 0.0
    %1256 = vmatprep.subr.mxu0 0.0
    %1257 = vmatpush1.msra.mxu0 0.0
    %1258 = vmatprep.subr.mxu0 0.0
    %1259 = vmatpush1.msra.mxu0 0.0
    %1260 = vmatprep.subr.mxu0 0.0
    %1261 = vmatpush1.msra.mxu0 0.0
    %1262 = vmatprep.subr.mxu0 0.0
    %1263 = vmatpush1.msra.mxu0 0.0
    %1264 = vmatprep.subr.mxu0 0.0
    %1265 = vmatpush1.msra.mxu0 0.0
    %1266 = vmatprep.subr.mxu0 0.0
    %1267 = vmatpush1.msra.mxu0 0.0
    %1268 = vmatprep.subr.mxu0 0.0
    %1269 = vmatpush1.msra.mxu0 0.0
    %1270 = vmatprep.subr.mxu0 0.0
    %1271 = vmatpush1.msra.mxu0 0.0
    %1272 = vmatprep.subr.mxu0 0.0
    %1273 = vmatpush1.msra.mxu0 0.0
    %1274 = vmatprep.subr.mxu0 0.0
    %1275 = vmatpush1.msra.mxu0 0.0
    %1276 = vmatprep.subr.mxu0 0.0
    %1277 = vmatpush1.msra.mxu0 0.0
    %1278 = vmatprep.subr.mxu0 0.0
    %1279 = vmatpush1.msra.mxu0 0.0
    %1280 = vmatprep.subr.mxu0 0.0
    %1281 = vmatpush1.msra.mxu0 0.0
    %1282 = vmatprep.subr.mxu0 0.0
    %1283 = vmatpush1.msra.mxu0 0.0
    %1284 = vmatprep.subr.mxu0 0.0
    %1285 = vmatpush1.msra.mxu0 0.0
    %1286 = vmatprep.subr.mxu0 0.0
    %1287 = vmatpush1.msra.mxu0 0.0
    %1288 = vmatprep.subr.mxu0 0.0
    %1289 = vmatpush1.msra.mxu0 0.0
    %1290 = vmatprep.subr.mxu0 0.0
    %1291 = vmatpush1.msra.mxu0 0.0
    %1292 = vmatprep.subr.mxu0 0.0
    %1293 = vmatpush1.msra.mxu0 0.0
    %1294 = vmatprep.subr.mxu0 0.0
    %1295 = vmatpush1.msra.mxu0 0.0
    %1296 = vmatprep.subr.mxu0 0.0
    %1297 = vmatpush1.msra.mxu0 0.0
    %1298 = vmatprep.subr.mxu0 0.0
    %1299 = vmatpush1.msra.mxu0 0.0
    %1300 = vmatprep.subr.mxu0 0.0
    %1301 = vmatpush1.msra.mxu0 0.0
    %1302 = vmatprep.subr.mxu0 0.0
    %1303 = vmatpush1.msra.mxu0 0.0
    %1304 = vmatprep.subr.mxu0 0.0
    %1305 = vmatpush1.msra.mxu0 0.0
    %1306 = vmatprep.mubr.f32.mxu0 0.0
    %1307 = vmatmul.mubr.f32.gmra.mrb[0].mxu0 %v1240
    %v1308 = vpop.f32.mrb[0].mxu0
    %v1309 = vadd.f32 %v1235, %v1308
    %v1310 = vpop.f32.mrb[0].mxu0
    %1311 = vdwg.mxu0
    %1312 = vmatprep.subr.mxu0 0.0
    %1313 = vmatpush1.msra.mxu0 %v253
    %1314 = vmatprep.subr.mxu0 0.0
    %1315 = vmatpush1.msra.mxu0 %v254
    %1316 = vmatprep.subr.mxu0 0.0
    %1317 = vmatpush1.msra.mxu0 %v255
    %1318 = vmatprep.subr.mxu0 0.0
    %1319 = vmatpush1.msra.mxu0 %v256
    %1320 = vmatprep.subr.mxu0 0.0
    %1321 = vmatpush1.msra.mxu0 0.0
    %1322 = vmatprep.subr.mxu0 0.0
    %1323 = vmatpush1.msra.mxu0 0.0
    %1324 = vmatprep.subr.mxu0 0.0
    %1325 = vmatpush1.msra.mxu0 0.0
    %1326 = vmatprep.subr.mxu0 0.0
    %1327 = vmatpush1.msra.mxu0 0.0
    %1328 = vmatprep.subr.mxu0 0.0
    %1329 = vmatpush1.msra.mxu0 0.0
    %1330 = vmatprep.subr.mxu0 0.0
    %1331 = vmatpush1.msra.mxu0 0.0
    %1332 = vmatprep.subr.mxu0 0.0
    %1333 = vmatpush1.msra.mxu0 0.0
    %1334 = vmatprep.subr.mxu0 0.0
    %1335 = vmatpush1.msra.mxu0 0.0
    %1336 = vmatprep.subr.mxu0 0.0
    %1337 = vmatpush1.msra.mxu0 0.0
    %1338 = vmatprep.subr.mxu0 0.0
    %1339 = vmatpush1.msra.mxu0 0.0
    %1340 = vmatprep.subr.mxu0 0.0
    %1341 = vmatpush1.msra.mxu0 0.0
    %1342 = vmatprep.subr.mxu0 0.0
    %1343 = vmatpush1.msra.mxu0 0.0
    %1344 = vmatprep.subr.mxu0 0.0
    %1345 = vmatpush1.msra.mxu0 0.0
    %1346 = vmatprep.subr.mxu0 0.0
    %1347 = vmatpush1.msra.mxu0 0.0
    %1348 = vmatprep.subr.mxu0 0.0
    %1349 = vmatpush1.msra.mxu0 0.0
    %1350 = vmatprep.subr.mxu0 0.0
    %1351 = vmatpush1.msra.mxu0 0.0
    %1352 = vmatprep.subr.mxu0 0.0
    %1353 = vmatpush1.msra.mxu0 0.0
    %1354 = vmatprep.subr.mxu0 0.0
    %1355 = vmatpush1.msra.mxu0 0.0
    %1356 = vmatprep.subr.mxu0 0.0
    %1357 = vmatpush1.msra.mxu0 0.0
    %1358 = vmatprep.subr.mxu0 0.0
    %1359 = vmatpush1.msra.mxu0 0.0
    %1360 = vmatprep.subr.mxu0 0.0
    %1361 = vmatpush1.msra.mxu0 0.0
    %1362 = vmatprep.subr.mxu0 0.0
    %1363 = vmatpush1.msra.mxu0 0.0
    %1364 = vmatprep.subr.mxu0 0.0
    %1365 = vmatpush1.msra.mxu0 0.0
    %1366 = vmatprep.subr.mxu0 0.0
    %1367 = vmatpush1.msra.mxu0 0.0
    %1368 = vmatprep.subr.mxu0 0.0
    %1369 = vmatpush1.msra.mxu0 0.0
    %1370 = vmatprep.subr.mxu0 0.0
    %1371 = vmatpush1.msra.mxu0 0.0
    %1372 = vmatprep.subr.mxu0 0.0
    %1373 = vmatpush1.msra.mxu0 0.0
    %1374 = vmatprep.subr.mxu0 0.0
    %1375 = vmatpush1.msra.mxu0 0.0
    %1376 = vmatprep.mubr.f32.mxu0 0.0
    %1377 = vmatmul.mubr.f32.gmra.mrb[0].mxu0 %v1240
    %v1378 = vpop.f32.mrb[0].mxu0
    %v1379 = vadd.f32 0.0, %v1378
    %v1380 = vpop.f32.mrb[0].mxu0
    %1381 = vdwg.mxu0
    %vm1382 = vcmask 1041408
    %v1383 = vsel %vm1382, %v1309, -inf
    %1384 = vmax.xlane.f32.xlu0 %v1383
    %v1385 = vpop.xlane.xlu0 %1384
    %v1386 = vsub.f32 %v1309, %v1385
    %v1387 = vmul.f32 %v1386, 1.442695
    %v1388 = vpow.pop %v1387
    %v1389 = vsel %vm1382, %v1388, 0.0
    %1390 = vadd.xlane.f32.xlu0 %v1389
    %v1391 = vpop.xlane.xlu0 %1390
    %v1392 = vld [vmem:[#allocation5] ss:$2 sm:$0xff]
    %v1393 = vlaneseq
    %v1394 = vshrl.u32 %v1393, 7
    %v1395 = vsub.s32 0, %v1394
    %v1396 = vrot.slane %v1379, %v1395
    %v1397 = vadd.f32 %v1392, %v1396
    %v1399 = vlaneseq
    %v1400 = vshrl.u32 %v1399, 7
    %v1401 = vsub.s32 0, %v1400
    %v1402 = vrot.slane %v257, %v1401
    %v1404 = vadd.f32 %v1397, %v1402
    %v1405 = vtanh.pop %v1404
    %v1407 = vlaneseq
    %v1408 = vshrl.u32 %v1407, 7
    %v1409 = vsub.s32 0, %v1408
    %v1410 = vrot.slane %v258, %v1409
    %v1412 = vmul.f32 %v1405, %v1410
    %v1413 = vsel %vm263, %v1412, 0.0
    %1414 = vadd.xlane.f32.xlu0 %v1413
    %v1415 = vpop.xlane.xlu0 %1414
    %v1417 = vlaneseq
    %v1418 = vshrl.u32 %v1417, 7
    %v1419 = vsub.s32 0, %v1418
    %v1420 = vrot.slane %v259, %v1419
    %v1422 = vadd.f32 %v1415, %v1420
    %vm1423 = vcmask 7168
    %v1424 = vsel %vm1423, %v1422, -inf
    %v1425 = vrot.slane %v1424, 4
    %v1426 = vmax.f32 %v1424, %v1425
    %v1427 = vrot.slane %v1426, 2
    %v1428 = vmax.f32 %v1426, %v1427
    %v1429 = vrot.slane %v1428, 1
    %v1430 = vmax.f32 %v1428, %v1429
    %v1431 = vmax.f32 %v1385, %v1430
    %v1432 = vsub.f32 %v1385, %v1431
    %v1433 = vmul.f32 %v1432, 1.442695
    %v1434 = vpow.pop %v1433
    %v1435 = vlaneseq
    %v1436 = vshrl.u32 %v1435, 7
    %v1437 = vsub.s32 0, %v1436
    %v1438 = vrot.slane %v1431, %v1437
    %v1439 = vsub.f32 %v1422, %v1438
    %v1440 = vmul.f32 %v1439, 1.442695
    %v1441 = vpow.pop %v1440
    %v1442 = vmul.f32 %v1391, %v1434
    %v1443 = vsel %vm1423, %v1441, 0.0
    %v1444 = vrot.slane %v1443, 4
    %v1445 = vadd.f32 %v1443, %v1444
    %v1446 = vrot.slane %v1445, 2
    %v1447 = vadd.f32 %v1445, %v1446
    %v1448 = vrot.slane %v1447, 1
    %v1449 = vadd.f32 %v1447, %v1448
    %v1450 = vadd.f32 %v1442, %v1449
    %v1451 = vrcp.pop %v1450
    %v1452 = vmul.f32 %v1434, %v1451
    %v1453 = vlaneseq
    %v1454 = vshrl.u32 %v1453, 7
    %v1455 = vsub.s32 0, %v1454
    %v1456 = vrot.slane %v1451, %v1455
    %v1457 = vmul.f32 %v1441, %v1456
    %v1458 = vld [vmem:[%s3] ss:$2 sm:$0xff]
    %1460 = vset.pattern.permute.xlu0 0
    %1461 = vperm.xlu0 %1460, %v1457
    %v1462 = vpop.permute.xlu0 %1461
    %v1464 = vmul.f32 %v1462, %v1458
    %v1465 = vrot.slane %v1464, 4
    %v1466 = vadd.f32 %v1464, %v1465
    %v1467 = vrot.slane %v1466, 2
    %v1468 = vadd.f32 %v1466, %v1467
    %v1469 = vrot.slane %v1468, 1
    %v1470 = vadd.f32 %v1468, %v1469
    %s1471 = scalar_lea.vmem [#allocation5], 1
    %v1472 = vld [vmem:[%s1471] ss:$2 sm:$0xff]
    %v1473 = vlaneseq
    %v1474 = vshrl.u32 %v1473, 7
    %v1475 = vsub.s32 1, %v1474
    %v1476 = vrot.slane %v1379, %v1475
    %v1477 = vadd.f32 %v1472, %v1476
    %v1478 = vadd.f32 %v1477, %v1402
    %v1479 = vtanh.pop %v1478
    %v1480 = vmul.f32 %v1479, %v1410
    %v1481 = vsel %vm263, %v1480, 0.0
    %1482 = vadd.xlane.f32.xlu0 %v1481
    %v1483 = vpop.xlane.xlu0 %1482
    %v1484 = vadd.f32 %v1483, %v1420
    %v1485 = vsel %vm1423, %v1484, -inf
    %v1486 = vrot.slane %v1485, 4
    %v1487 = vmax.f32 %v1485, %v1486
    %v1488 = vrot.slane %v1487, 2
    %v1489 = vmax.f32 %v1487, %v1488
    %v1490 = vrot.slane %v1489, 1
    %v1491 = vmax.f32 %v1489, %v1490
    %v1492 = vmax.f32 %v1385, %v1491
    %v1493 = vsub.f32 %v1385, %v1492
    %v1494 = vmul.f32 %v1493, 1.442695
    %v1495 = vpow.pop %v1494
    %v1496 = vlaneseq
    %v1497 = vshrl.u32 %v1496, 7
    %v1498 = vsub.s32 1, %v1497
    %v1499 = vrot.slane %v1492, %v1498
    %v1500 = vsub.f32 %v1484, %v1499
    %v1501 = vmul.f32 %v1500, 1.442695
    %v1502 = vpow.pop %v1501
    %v1503 = vmul.f32 %v1391, %v1495
    %v1504 = vsel %vm1423, %v1502, 0.0
    %v1505 = vrot.slane %v1504, 4
    %v1506 = vadd.f32 %v1504, %v1505
    %v1507 = vrot.slane %v1506, 2
    %v1508 = vadd.f32 %v1506, %v1507
    %v1509 = vrot.slane %v1508, 1
    %v1510 = vadd.f32 %v1508, %v1509
    %v1511 = vadd.f32 %v1503, %v1510
    %v1512 = vrcp.pop %v1511
    %v1513 = vmul.f32 %v1495, %v1512
    %v1514 = vlaneseq
    %v1515 = vshrl.u32 %v1514, 7
    %v1516 = vsub.s32 1, %v1515
    %v1517 = vrot.slane %v1512, %v1516
    %v1518 = vmul.f32 %v1502, %v1517
    %s1519 = scalar_lea.vmem %s3, 1
    %v1520 = vld [vmem:[%s1519] ss:$2 sm:$0xff]
    %1522 = vset.pattern.permute.xlu0 0
    %1523 = vperm.xlu0 %1522, %v1518
    %v1524 = vpop.permute.xlu0 %1523
    %v1526 = vmul.f32 %v1524, %v1520
    %v1527 = vrot.slane %v1526, 4
    %v1528 = vadd.f32 %v1526, %v1527
    %v1529 = vrot.slane %v1528, 2
    %v1530 = vadd.f32 %v1528, %v1529
    %v1531 = vrot.slane %v1530, 1
    %v1532 = vadd.f32 %v1530, %v1531
    %v1533 = vsel %vm840, %v1452, %v1513
    %v1534 = vsel %vm840, %v1470, %v1532
    %1536 = vset.pattern.permute.xlu0 0
    %1537 = vperm.xlu0 %1536, %v1533
    %v1538 = vpop.permute.xlu0 %1537
    %v1540 = vmul.f32 %v1388, %v1538
    %v1542 = vlaneseq
    %v1543 = vshrl.u32 %v1542, 7
    %v1544 = vsub.s32 0, %v1543
    %v1545 = vrot.slane %v260, %v1544
    %v1547 = vmul.f32 %v1545, %v1534
    %v1548 = vadd.f32 %v1540, %v1547
    %1549 = vst [vmem:[#allocation13] sm:$0x3] %v1548
    // Predicated region
    $region166: #{tpu_custom_call.1} parent=1 // pred_check
      _
    $region167: #{tpu_custom_call.1} parent=1 // pred_check_branch
      %1551 = sbr.rel (0) target = $region169
    $region168: #{tpu_custom_call.1} parent=1 // pred_region
      %s1553 = ssub.s32 32, 32
      %1554 = vsyncadd [#allocation10], %s1553
      %s1556 = sshll.u32 [#allocation13], 4
      %s1557 = int_to_ptr.vmem [resolvable:$true] %s1556
      %1559 = dma.vmem_to_hbm [thread:$0]  %s1557, 32, %s25, [#allocation10]
    $region169: #{tpu_custom_call.1} parent=1 // pred_fallthru
      _
    // Predicated region
    $region170: #{tpu_custom_call.1} parent=1 // pred_check
      _
    $region171: #{tpu_custom_call.1} parent=1 // pred_check_branch
      %1561 = sbr.rel (0) target = $region173
    $region172: #{tpu_custom_call.1} parent=1 // pred_region
      %s1563 = ssub.s32 32, 32
      %1564 = vsyncadd [#allocation15], %s1563
      %s1566 = sshll.u32 [#allocation14], 4
      %s1567 = int_to_ptr.vmem [resolvable:$true] %s1566
      %1569 = dma.vmem_to_hbm [thread:$0]  %s1567, 32, %s26, [#allocation15]
    $region173: #{tpu_custom_call.1} parent=1 // pred_fallthru
      _
    // Predicated region
    $region174: #{tpu_custom_call.1} parent=1 // pred_check
      _
    $region175: #{tpu_custom_call.1} parent=1 // pred_check_branch
      %1571 = sbr.rel (0) target = $region177
    $region176: #{tpu_custom_call.1} parent=1 // pred_region
      %1572 = dma.done [#allocation10], 32
    $region177: #{tpu_custom_call.1} parent=1 // pred_fallthru
      _
    // Predicated region
    $region178: #{tpu_custom_call.1} parent=1 // pred_check
      _
    $region179: #{tpu_custom_call.1} parent=1 // pred_check_branch
      %1574 = sbr.rel (0) target = $region181
    $region180: #{tpu_custom_call.1} parent=1 // pred_region
      %1575 = dma.done [#allocation15], 32
    $region181: #{tpu_custom_call.1} parent=1 // pred_fallthru
      _
    %1576 = vsyncpa [#allocation9], 1
    %1577 = vsyncpa [#allocation10], 1
    %1578 = vsyncpa [#allocation15], 1
    %1579 = vsyncpa [#allocation11], 1
  %1580 = vsyncmov [#allocation6]
  %s1581 = vpop.sfrf %1580
  %p1582 = scmp.eq.s32.totalorder %s1581, 0
  %p1583 = pneg %p1582
  %1585 = shalt.err (%p1583)
  %s1586 = scalar_lea.sflag [#allocation6], 1
  %1587 = vsyncmov %s1586
  %s1588 = vpop.sfrf %1587
  %p1589 = scmp.eq.s32.totalorder %s1588, 0
  %p1590 = pneg %p1589
  %1592 = shalt.err (%p1590)

</llo_original>
